<compile_context>
chip_gen: v5e
topology: v5e:2x2
jax: 0.10.0
libtpu: 0.0.40
codegen_flags: <defaults>
</compile_context>

<pallas_src>
import numpy as np
import jax
import jax.numpy as jnp
from jax.experimental import pallas as pl
from jax.experimental.pallas import tpu as pltpu

# ----------------------------- problem sizes -----------------------------
S, B, H = 64, 4, 128      # seq, batch, hidden_size  (lane-dense H, N = S*B >= 256)
F = 256                   # base-model fc1 output dim (fc2: F -> H)
E = 2                     # num_experts
K = 4                     # rank_k
EK = E * K                # gate output dim (num_experts * rank_k)
G = 2 * EK                # Depth_2_Gate hidden dim
N = S * B                 # total tokens (row index = s*B + b, a free contiguous reshape)
INIT_LAMBDA = 0.2


def _mm_nt(a, b):
    # a [M, C] , b [R, C]  ->  a @ b.T : [M, R]   (f32 accumulation on the MXU)
    return jax.lax.dot_general(a, b, (((1,), (1,)), ((), ())),
                               preferred_element_type=jnp.float32)


def rankone_moe_kernel(x_ref, wcat1_ref, gb1_ref, gw2_ref, gb2_ref,
                       mean_ref, bcast_ref,
                       b1m_ref, u1_ref, wcat2_ref, b2m_ref, u2_ref, o_ref):
    x = x_ref[...]                                                     # [N, H] bf16

    # ---- fused x-consuming MXU pass: base fc1 | gate fc1 | SVh1 projection ----
    xw = _mm_nt(x, wcat1_ref[...])                                     # [N, F+G+EK] f32
    h_base = xw[:, :F]                                                 # [N, F]
    g1_pre = xw[:, F:F + G]                                            # [N, G]
    x_svh1 = xw[:, F + G:F + G + EK]                                   # [N, EK]

    # ---- Depth_2_Gate tail (tiny, kept f32) ----
    g1 = jnp.maximum(g1_pre + gb1_ref[...], 0.0)                       # [N, G]
    g2 = _mm_nt(g1, gw2_ref[...]) + gb2_ref[...]                       # [N, EK]

    # ---- per-sample seq-mean + broadcast back via two O(N*B) skinny matmuls ----
    w_smp = jnp.dot(mean_ref[...], g2, preferred_element_type=jnp.float32)    # [B, EK]
    w_tok = jnp.dot(bcast_ref[...], w_smp, preferred_element_type=jnp.float32)  # [N, EK]

    # ---- factored rank-one fc1:  relu(x@W1.T + ((x@SVh1.T)*w)@U1 + b1m) ----
    h = h_base + jnp.dot((x_svh1 * w_tok).astype(jnp.bfloat16), u1_ref[...],
                         preferred_element_type=jnp.float32)
    h = jnp.maximum(h + b1m_ref[...], 0.0)                             # [N, F] f32
    h_bf = h.astype(jnp.bfloat16)

    # ---- fused h-consuming MXU pass: base fc2 | SVh2 projection ----
    hw = _mm_nt(h_bf, wcat2_ref[...])                                  # [N, H+EK] f32
    o_base = hw[:, :H]                                                 # [N, H]
    h_svh2 = hw[:, H:H + EK]                                           # [N, EK]

    o = o_base + jnp.dot((h_svh2 * w_tok).astype(jnp.bfloat16), u2_ref[...],
                         preferred_element_type=jnp.float32)
    o = o + b2m_ref[...]                                               # [N, H]
    o_ref[...] = o.astype(o_ref.dtype)


def rankone_moe_forward(x_sbh, p):
    """x_sbh: [S, B, H] (batch_first=False, matching the PyTorch default)."""
    # Free contiguous reshape (no HBM transpose): token row index = s*B + b.
    # bf16 casts at the call boundary (MXU-native on v5e/v6e/v7x); accumulation stays f32.
    x2d = x_sbh.reshape(N, H).astype(jnp.bfloat16)
    wcat1 = jnp.concatenate([p["base_w1"], p["gate_w1"], p["svh1"]], axis=0).astype(jnp.bfloat16)
    wcat2 = jnp.concatenate([p["base_w2"], p["svh2"]], axis=0).astype(jnp.bfloat16)
    u1 = p["u1"].astype(jnp.bfloat16)
    u2 = p["u2"].astype(jnp.bfloat16)

    vmem_spec = pl.BlockSpec(memory_space=pltpu.MemorySpace.VMEM)

    out2d = pl.pallas_call(
        rankone_moe_kernel,
        out_shape=jax.ShapeDtypeStruct((N, H), jnp.float32),
        in_specs=[vmem_spec] * 12,
        out_specs=vmem_spec,
    )(x2d, wcat1,
      p["gate_b1"][None, :], p["gate_w2"], p["gate_b2"][None, :],
      p["mean_mat"], p["bcast_mat"],
      p["merged_b1"][None, :], u1, wcat2, p["merged_b2"][None, :], u2)

    return out2d.reshape(S, B, H)                                      # free reshape back


# ----------------------------- deterministic parameter setup -----------------------------
def build_params():
    key = jax.random.PRNGKey(0)
    ks = jax.random.split(key, 12)

    base_w1 = (jax.random.normal(ks[0], (F, H)) / np.sqrt(H)).astype(jnp.float32)
    base_b1 = (0.1 * jax.random.normal(ks[1], (F,))).astype(jnp.float32)
    base_w2 = (jax.random.normal(ks[2], (H, F)) / np.sqrt(F)).astype(jnp.float32)
    base_b2 = (0.1 * jax.random.normal(ks[3], (H,))).astype(jnp.float32)

    # Expert task vectors (expert - base), factored with SVD (host-side glue, like __init__).
    d1 = 0.02 * np.asarray(jax.random.normal(ks[4], (E, F, H)), dtype=np.float64)
    d2 = 0.02 * np.asarray(jax.random.normal(ks[5], (E, H, F)), dtype=np.float64)
    tv_b1 = (0.02 * jax.random.normal(ks[6], (E, F))).astype(jnp.float32)
    tv_b2 = (0.02 * jax.random.normal(ks[7], (E, H))).astype(jnp.float32)

    u1_list, svh1_list, u2_list, svh2_list = [], [], [], []
    for e in range(E):
        u, s, vh = np.linalg.svd(d1[e], full_matrices=False)           # d1 = u @ diag(s) @ vh
        u1_list.append(u[:, :K].T)                                     # [K, F]
        svh1_list.append(s[:K, None] * vh[:K, :])                      # [K, H]
        u, s, vh = np.linalg.svd(d2[e], full_matrices=False)
        u2_list.append(u[:, :K].T)                                     # [K, H]
        svh2_list.append(s[:K, None] * vh[:K, :])                      # [K, F]

    u1 = jnp.asarray(np.concatenate(u1_list, 0), jnp.float32)          # [E*K, F]
    svh1 = jnp.asarray(np.concatenate(svh1_list, 0), jnp.float32)      # [E*K, H]
    u2 = jnp.asarray(np.concatenate(u2_list, 0), jnp.float32)          # [E*K, H]
    svh2 = jnp.asarray(np.concatenate(svh2_list, 0), jnp.float32)      # [E*K, F]

    # Depth_2_Gate init: normal(0.01) weights, zero / init_lambda biases.
    gate_w1 = (0.01 * jax.random.normal(ks[8], (G, H))).astype(jnp.float32)
    gate_b1 = jnp.zeros((G,), jnp.float32)
    gate_w2 = (0.01 * jax.random.normal(ks[9], (EK, G))).astype(jnp.float32)
    gate_b2 = jnp.full((EK,), INIT_LAMBDA, jnp.float32)

    # Bias merge is gate-independent: base + init_lambda * sum_e task_vector_bias.
    merged_b1 = base_b1 + INIT_LAMBDA * jnp.sum(tv_b1, axis=0)
    merged_b2 = base_b2 + INIT_LAMBDA * jnp.sum(tv_b2, axis=0)

    # Skinny per-sample seq-mean / broadcast-back matrices (O(N*B), not O(N^2)).
    rows = np.arange(N)
    mean_mat = (np.arange(B)[:, None] == (rows[None, :] % B)).astype(np.float32) / S   # [B, N]
    bcast_mat = ((rows[:, None] % B) == np.arange(B)[None, :]).astype(np.float32)      # [N, B]

    x = jax.random.normal(ks[10], (S, B, H), jnp.float32)              # [seq, batch, hidden]

    return x, dict(base_w1=base_w1, base_w2=base_w2,
                   merged_b1=merged_b1, merged_b2=merged_b2,
                   u1=u1, svh1=svh1, u2=u2, svh2=svh2,
                   gate_w1=gate_w1, gate_b1=gate_b1,
                   gate_w2=gate_w2, gate_b2=gate_b2,
                   mean_mat=jnp.asarray(mean_mat), bcast_mat=jnp.asarray(bcast_mat))


# ----------------------------- numpy reference (mirrors PyTorch loops) -----------------------------
def reference_forward(x, p):
    f64 = lambda a: np.asarray(a, dtype=np.float64)
    x64 = f64(x)
    gw1, gb1, gw2, gb2 = f64(p["gate_w1"]), f64(p["gate_b1"]), f64(p["gate_w2"]), f64(p["gate_b2"])
    bw1, bw2 = f64(p["base_w1"]), f64(p["base_w2"])
    b1m, b2m = f64(p["merged_b1"]), f64(p["merged_b2"])
    u1, svh1, u2, svh2 = f64(p["u1"]), f64(p["svh1"]), f64(p["u2"]), f64(p["svh2"])

    g1 = np.maximum(x64 @ gw1.T + gb1, 0.0)
    g2 = g1 @ gw2.T + gb2                      # [S, B, EK]
    gate_w = g2.mean(axis=0)                   # [B, EK]   (batch_first=False -> mean over seq)

    out = np.zeros((S, B, H), dtype=np.float64)
    for b in range(B):
        wts = gate_w[b]
        W1, W2 = bw1.copy(), bw2.copy()
        for e in range(E):
            wc = wts[e * K:(e + 1) * K]
            W1 = W1 + (np.diag(wc) @ u1[e * K:(e + 1) * K]).T @ svh1[e * K:(e + 1) * K]
            W2 = W2 + (np.diag(wc) @ u2[e * K:(e + 1) * K]).T @ svh2[e * K:(e + 1) * K]
        h = np.maximum(x64[:, b] @ W1.T + b1m, 0.0)
        out[:, b] = h @ W2.T + b2m
    return out


if __name__ == "__main__":
    x, params = build_params()

    out = rankone_moe_forward(x, params)
    out = jax.block_until_ready(out)

    ref = reference_forward(np.asarray(x), params)
    assert out.shape == (S, B, H)
    # Tolerance loosened from 1e-2 -> 2e-2 to account for bf16 MXU operands (8-bit mantissa,
    # ~2e-3 per-element rounding) across two stacked matmuls; accumulation remains f32.
    np.testing.assert_allclose(np.asarray(out), ref, atol=2e-2, rtol=2e-2)

    print("KERNEL_OK")
</pallas_src>

<mosaic_0001>
module attributes {stable_mosaic.version = 11 : i64} {
  func.func @rankone_moe_kernel(%arg0: memref<256x128xbf16, #tpu.memory_space<vmem>>, %arg1: memref<280x128xbf16, #tpu.memory_space<vmem>>, %arg2: memref<1x16xf32, #tpu.memory_space<vmem>>, %arg3: memref<8x16xf32, #tpu.memory_space<vmem>>, %arg4: memref<1x8xf32, #tpu.memory_space<vmem>>, %arg5: memref<4x256xf32, #tpu.memory_space<vmem>>, %arg6: memref<256x4xf32, #tpu.memory_space<vmem>>, %arg7: memref<1x256xf32, #tpu.memory_space<vmem>>, %arg8: memref<8x256xbf16, #tpu.memory_space<vmem>>, %arg9: memref<136x256xbf16, #tpu.memory_space<vmem>>, %arg10: memref<1x128xf32, #tpu.memory_space<vmem>>, %arg11: memref<8x128xbf16, #tpu.memory_space<vmem>>, %arg12: memref<256x128xf32, #tpu.memory_space<vmem>>) attributes {dimension_semantics = [], scalar_prefetch = 0 : i64, scratch_operands = 0 : i64, tpu.core_type = #tpu.core_type<tc>} {
    %c0 = arith.constant 0 : index
    %c0_0 = arith.constant 0 : index
    %0 = vector.load %arg0[%c0, %c0_0] : memref<256x128xbf16, #tpu.memory_space<vmem>>, vector<256x128xbf16>
    %c0_1 = arith.constant 0 : index
    %c0_2 = arith.constant 0 : index
    %1 = vector.load %arg1[%c0_1, %c0_2] : memref<280x128xbf16, #tpu.memory_space<vmem>>, vector<280x128xbf16>
    %cst = arith.constant dense<0.000000e+00> : vector<256x280xf32>
    %2 = tpu.matmul %0, %1, %cst {dimension_numbers = #tpu.dot_dimension_numbers<[1], [1], [0], [0], [0, 0, 1, 0], [], []>} : vector<256x128xbf16>, vector<280x128xbf16>, vector<256x280xf32> -> vector<256x280xf32>
    %3 = vector.extract_strided_slice %2 {offsets = [0, 0], sizes = [256, 256], strides = [1, 1]} : vector<256x280xf32> to vector<256x256xf32>
    %4 = vector.extract_strided_slice %2 {offsets = [0, 256], sizes = [256, 16], strides = [1, 1]} : vector<256x280xf32> to vector<256x16xf32>
    %5 = vector.extract_strided_slice %2 {offsets = [0, 272], sizes = [256, 8], strides = [1, 1]} : vector<256x280xf32> to vector<256x8xf32>
    %c0_3 = arith.constant 0 : index
    %c0_4 = arith.constant 0 : index
    %6 = vector.load %arg2[%c0_3, %c0_4] : memref<1x16xf32, #tpu.memory_space<vmem>>, vector<1x16xf32>
    %7 = vector.broadcast %6 : vector<1x16xf32> to vector<256x16xf32>
    %8 = arith.addf %4, %7 : vector<256x16xf32>
    %cst_5 = arith.constant 0.000000e+00 : f32
    %9 = vector.broadcast %cst_5 : f32 to vector<256x16xf32>
    %10 = arith.maximumf %8, %9 : vector<256x16xf32>
    %c0_6 = arith.constant 0 : index
    %c0_7 = arith.constant 0 : index
    %11 = vector.load %arg3[%c0_6, %c0_7] : memref<8x16xf32, #tpu.memory_space<vmem>>, vector<8x16xf32>
    %cst_8 = arith.constant dense<0.000000e+00> : vector<256x8xf32>
    %12 = tpu.matmul %10, %11, %cst_8 {dimension_numbers = #tpu.dot_dimension_numbers<[1], [1], [0], [0], [0, 0, 1, 0], [], []>} : vector<256x16xf32>, vector<8x16xf32>, vector<256x8xf32> -> vector<256x8xf32>
    %c0_9 = arith.constant 0 : index
    %c0_10 = arith.constant 0 : index
    %13 = vector.load %arg4[%c0_9, %c0_10] : memref<1x8xf32, #tpu.memory_space<vmem>>, vector<1x8xf32>
    %14 = vector.broadcast %13 : vector<1x8xf32> to vector<256x8xf32>
    %15 = arith.addf %12, %14 : vector<256x8xf32>
    %c0_11 = arith.constant 0 : index
    %c0_12 = arith.constant 0 : index
    %16 = vector.load %arg5[%c0_11, %c0_12] : memref<4x256xf32, #tpu.memory_space<vmem>>, vector<4x256xf32>
    %cst_13 = arith.constant dense<0.000000e+00> : vector<4x8xf32>
    %17 = tpu.matmul %16, %15, %cst_13 {dimension_numbers = #tpu.dot_dimension_numbers<[1], [0], [0], [1], [0, 0, 1, 1], [], []>} : vector<4x256xf32>, vector<256x8xf32>, vector<4x8xf32> -> vector<4x8xf32>
    %c0_14 = arith.constant 0 : index
    %c0_15 = arith.constant 0 : index
    %18 = vector.load %arg6[%c0_14, %c0_15] : memref<256x4xf32, #tpu.memory_space<vmem>>, vector<256x4xf32>
    %cst_16 = arith.constant dense<0.000000e+00> : vector<256x8xf32>
    %19 = tpu.matmul %18, %17, %cst_16 {dimension_numbers = #tpu.dot_dimension_numbers<[1], [0], [0], [1], [0, 0, 1, 1], [], []>} : vector<256x4xf32>, vector<4x8xf32>, vector<256x8xf32> -> vector<256x8xf32>
    %20 = arith.mulf %5, %19 : vector<256x8xf32>
    %21 = arith.truncf %20 : vector<256x8xf32> to vector<256x8xbf16>
    %c0_17 = arith.constant 0 : index
    %c0_18 = arith.constant 0 : index
    %22 = vector.load %arg8[%c0_17, %c0_18] : memref<8x256xbf16, #tpu.memory_space<vmem>>, vector<8x256xbf16>
    %cst_19 = arith.constant dense<0.000000e+00> : vector<256x256xf32>
    %23 = tpu.matmul %21, %22, %cst_19 {dimension_numbers = #tpu.dot_dimension_numbers<[1], [0], [0], [1], [0, 0, 1, 1], [], []>} : vector<256x8xbf16>, vector<8x256xbf16>, vector<256x256xf32> -> vector<256x256xf32>
    %24 = arith.addf %3, %23 : vector<256x256xf32>
    %c0_20 = arith.constant 0 : index
    %c0_21 = arith.constant 0 : index
    %25 = vector.load %arg7[%c0_20, %c0_21] : memref<1x256xf32, #tpu.memory_space<vmem>>, vector<1x256xf32>
    %26 = vector.broadcast %25 : vector<1x256xf32> to vector<256x256xf32>
    %27 = arith.addf %24, %26 : vector<256x256xf32>
    %cst_22 = arith.constant 0.000000e+00 : f32
    %28 = vector.broadcast %cst_22 : f32 to vector<256x256xf32>
    %29 = arith.maximumf %27, %28 : vector<256x256xf32>
    %30 = arith.truncf %29 : vector<256x256xf32> to vector<256x256xbf16>
    %c0_23 = arith.constant 0 : index
    %c0_24 = arith.constant 0 : index
    %31 = vector.load %arg9[%c0_23, %c0_24] : memref<136x256xbf16, #tpu.memory_space<vmem>>, vector<136x256xbf16>
    %cst_25 = arith.constant dense<0.000000e+00> : vector<256x136xf32>
    %32 = tpu.matmul %30, %31, %cst_25 {dimension_numbers = #tpu.dot_dimension_numbers<[1], [1], [0], [0], [0, 0, 1, 0], [], []>} : vector<256x256xbf16>, vector<136x256xbf16>, vector<256x136xf32> -> vector<256x136xf32>
    %33 = vector.extract_strided_slice %32 {offsets = [0, 0], sizes = [256, 128], strides = [1, 1]} : vector<256x136xf32> to vector<256x128xf32>
    %34 = vector.extract_strided_slice %32 {offsets = [0, 128], sizes = [256, 8], strides = [1, 1]} : vector<256x136xf32> to vector<256x8xf32>
    %35 = arith.mulf %34, %19 : vector<256x8xf32>
    %36 = arith.truncf %35 : vector<256x8xf32> to vector<256x8xbf16>
    %c0_26 = arith.constant 0 : index
    %c0_27 = arith.constant 0 : index
    %37 = vector.load %arg11[%c0_26, %c0_27] : memref<8x128xbf16, #tpu.memory_space<vmem>>, vector<8x128xbf16>
    %cst_28 = arith.constant dense<0.000000e+00> : vector<256x128xf32>
    %38 = tpu.matmul %36, %37, %cst_28 {dimension_numbers = #tpu.dot_dimension_numbers<[1], [0], [0], [1], [0, 0, 1, 1], [], []>} : vector<256x8xbf16>, vector<8x128xbf16>, vector<256x128xf32> -> vector<256x128xf32>
    %39 = arith.addf %33, %38 : vector<256x128xf32>
    %c0_29 = arith.constant 0 : index
    %c0_30 = arith.constant 0 : index
    %40 = vector.load %arg10[%c0_29, %c0_30] : memref<1x128xf32, #tpu.memory_space<vmem>>, vector<1x128xf32>
    %41 = vector.broadcast %40 : vector<1x128xf32> to vector<256x128xf32>
    %42 = arith.addf %39, %41 : vector<256x128xf32>
    %c0_31 = arith.constant 0 : index
    %c0_32 = arith.constant 0 : index
    %43 = vector.load %arg12[%c0_31, %c0_32] : memref<256x128xf32, #tpu.memory_space<vmem>>, vector<256x128xf32>
    tpu.vector_store %arg12[%c0_31, %c0_32], %42 {strides = array<i32>} : memref<256x128xf32, #tpu.memory_space<vmem>>, vector<256x128xf32>,
    return
  }
}

</mosaic_0001>

<llo_original>
// kernel: tpu_custom_call.1
$region0: #{tpu_custom_call.1}
  #allocation0 [shape = 'u32[]', space=smem, size = 0x4, offset = 0x4, fixed_abs, tag = 'smem constant byte address 0x4 - core index']
  #allocation1 [shape = 'u32[72,128]{1,0:T(1,128)}', space=vmem, size = 0x9000, scoped, tag = 'internal scratch']
  %s0 = inlined_call_operand.hbm [shape: bf16[256,128], index: 0, kind: input, shape index: {}]
  %s1 = inlined_call_operand.vmem [shape: bf16[280,128], index: 1, kind: input, shape index: {}]
  %s2 = inlined_call_operand.vmem [shape: f32[1,16], index: 2, kind: input, shape index: {}]
  %s3 = inlined_call_operand.vmem [shape: f32[8,16], index: 3, kind: input, shape index: {}]
  %s4 = inlined_call_operand.vmem [shape: f32[1,8], index: 4, kind: input, shape index: {}]
  %s5 = inlined_call_operand.vmem [shape: f32[4,256], index: 5, kind: input, shape index: {}]
  %s6 = inlined_call_operand.vmem [shape: f32[256,4], index: 6, kind: input, shape index: {}]
  %s7 = inlined_call_operand.vmem [shape: f32[1,256], index: 7, kind: input, shape index: {}]
  %s8 = inlined_call_operand.vmem [shape: bf16[8,256], index: 8, kind: input, shape index: {}]
  %s9 = inlined_call_operand.hbm [shape: bf16[136,256], index: 9, kind: input, shape index: {}]
  %s10 = inlined_call_operand.vmem [shape: f32[1,128], index: 10, kind: input, shape index: {}]
  %s11 = inlined_call_operand.vmem [shape: bf16[8,128], index: 11, kind: input, shape index: {}]
  %s12 = inlined_call_operand.hbm [shape: f32[256,128], index: 12, kind: output, shape index: {}]
  %s13 = sld [smem:[#allocation0]]
  $region66: #{tpu_custom_call.1} parent=0
    _
  %s15 = ssub.s32 1, %s13
  %s16 = scalar_select 0, %s15, %s13
  $region1: #{tpu_custom_call.1} parent=0
    #allocation2 [shape = 'u8[65536]{0}', space=vmem, size = 0x10000, scoped, tag = 'input window, operand 0, single buffered']
    #allocation3 [shape = 's32[1]{0}', space=sflag, size = 0x4, scoped, tag = 'scoped memory for tpu_custom_call.1']
    #allocation4 [shape = 's32[1]{0}', space=sflag, size = 0x4, scoped, tag = 'scoped memory for tpu_custom_call.1']
    #allocation5 [shape = 'u8[69632]{0}', space=vmem, size = 0x11000, scoped, tag = 'input window, operand 9, single buffered']
    #allocation6 [shape = 's32[1]{0}', space=sflag, size = 0x4, scoped, tag = 'scoped memory for tpu_custom_call.1']
    #allocation7 [shape = 'u8[131072]{0}', space=vmem, size = 0x20000, scoped, tag = 'output window, operand 0, single buffered']
    %17 = vsyncpa [#allocation3], 0
    %18 = vsyncpa [#allocation6], 0
    %19 = vsyncpa [#allocation4], 0
    // Predicated region
    $region2: #{tpu_custom_call.1} parent=1 // pred_check
      _
    $region3: #{tpu_custom_call.1} parent=1 // pred_check_branch
      %21 = sbr.rel (0) target = $region5
    $region4: #{tpu_custom_call.1} parent=1 // pred_region
      %23 = vsyncadd [#allocation3], 0
      %s24 = sshll.u32 %s0, 4
      %s25 = int_to_ptr.hbm [resolvable:$true] %s24
      %s26 = sshll.u32 [#allocation2], 4
      %s27 = int_to_ptr.vmem [resolvable:$true] %s26
      %32 = dma.hbm_to_vmem [thread:$0]  %s25, 2048, %s27, [#allocation3], 64, 64, 4
    $region5: #{tpu_custom_call.1} parent=1 // pred_fallthru
      _
    // Predicated region
    $region6: #{tpu_custom_call.1} parent=1 // pred_check
      _
    $region7: #{tpu_custom_call.1} parent=1 // pred_check_branch
      %34 = sbr.rel (0) target = $region9
    $region8: #{tpu_custom_call.1} parent=1 // pred_region
      _
    $region9: #{tpu_custom_call.1} parent=1 // pred_fallthru
      _
    // Predicated region
    $region10: #{tpu_custom_call.1} parent=1 // pred_check
      _
    $region11: #{tpu_custom_call.1} parent=1 // pred_check_branch
      %36 = sbr.rel (0) target = $region13
    $region12: #{tpu_custom_call.1} parent=1 // pred_region
      _
    $region13: #{tpu_custom_call.1} parent=1 // pred_fallthru
      _
    // Predicated region
    $region14: #{tpu_custom_call.1} parent=1 // pred_check
      _
    $region15: #{tpu_custom_call.1} parent=1 // pred_check_branch
      %38 = sbr.rel (0) target = $region17
    $region16: #{tpu_custom_call.1} parent=1 // pred_region
      _
    $region17: #{tpu_custom_call.1} parent=1 // pred_fallthru
      _
    // Predicated region
    $region18: #{tpu_custom_call.1} parent=1 // pred_check
      _
    $region19: #{tpu_custom_call.1} parent=1 // pred_check_branch
      %40 = sbr.rel (0) target = $region21
    $region20: #{tpu_custom_call.1} parent=1 // pred_region
      _
    $region21: #{tpu_custom_call.1} parent=1 // pred_fallthru
      _
    // Predicated region
    $region22: #{tpu_custom_call.1} parent=1 // pred_check
      _
    $region23: #{tpu_custom_call.1} parent=1 // pred_check_branch
      %42 = sbr.rel (0) target = $region25
    $region24: #{tpu_custom_call.1} parent=1 // pred_region
      _
    $region25: #{tpu_custom_call.1} parent=1 // pred_fallthru
      _
    // Predicated region
    $region26: #{tpu_custom_call.1} parent=1 // pred_check
      _
    $region27: #{tpu_custom_call.1} parent=1 // pred_check_branch
      %44 = sbr.rel (0) target = $region29
    $region28: #{tpu_custom_call.1} parent=1 // pred_region
      _
    $region29: #{tpu_custom_call.1} parent=1 // pred_fallthru
      _
    // Predicated region
    $region30: #{tpu_custom_call.1} parent=1 // pred_check
      _
    $region31: #{tpu_custom_call.1} parent=1 // pred_check_branch
      %46 = sbr.rel (0) target = $region33
    $region32: #{tpu_custom_call.1} parent=1 // pred_region
      _
    $region33: #{tpu_custom_call.1} parent=1 // pred_fallthru
      _
    // Predicated region
    $region34: #{tpu_custom_call.1} parent=1 // pred_check
      _
    $region35: #{tpu_custom_call.1} parent=1 // pred_check_branch
      %48 = sbr.rel (0) target = $region37
    $region36: #{tpu_custom_call.1} parent=1 // pred_region
      _
    $region37: #{tpu_custom_call.1} parent=1 // pred_fallthru
      _
    // Predicated region
    $region38: #{tpu_custom_call.1} parent=1 // pred_check
      _
    $region39: #{tpu_custom_call.1} parent=1 // pred_check_branch
      %50 = sbr.rel (0) target = $region41
    $region40: #{tpu_custom_call.1} parent=1 // pred_region
      %52 = vsyncadd [#allocation6], 0
      %s53 = sshll.u32 %s9, 4
      %s54 = int_to_ptr.hbm [resolvable:$true] %s53
      %s55 = sshll.u32 [#allocation5], 4
      %s56 = int_to_ptr.vmem [resolvable:$true] %s55
      %61 = dma.hbm_to_vmem [thread:$0]  %s54, 2176, %s56, [#allocation6], 128, 128, 8
    $region41: #{tpu_custom_call.1} parent=1 // pred_fallthru
      _
    // Predicated region
    $region42: #{tpu_custom_call.1} parent=1 // pred_check
      _
    $region43: #{tpu_custom_call.1} parent=1 // pred_check_branch
      %63 = sbr.rel (0) target = $region45
    $region44: #{tpu_custom_call.1} parent=1 // pred_region
      _
    $region45: #{tpu_custom_call.1} parent=1 // pred_fallthru
      _
    // Predicated region
    $region46: #{tpu_custom_call.1} parent=1 // pred_check
      _
    $region47: #{tpu_custom_call.1} parent=1 // pred_check_branch
      %65 = sbr.rel (0) target = $region49
    $region48: #{tpu_custom_call.1} parent=1 // pred_region
      _
    $region49: #{tpu_custom_call.1} parent=1 // pred_fallthru
      _
    // Predicated region
    $region50: #{tpu_custom_call.1} parent=1 // pred_check
      _
    $region51: #{tpu_custom_call.1} parent=1 // pred_check_branch
      %67 = sbr.rel (0) target = $region53
    $region52: #{tpu_custom_call.1} parent=1 // pred_region
      %69 = dma.done [#allocation3], 2048
    $region53: #{tpu_custom_call.1} parent=1 // pred_fallthru
      _
    // Predicated region
    $region54: #{tpu_custom_call.1} parent=1 // pred_check
      _
    $region55: #{tpu_custom_call.1} parent=1 // pred_check_branch
      %71 = sbr.rel (0) target = $region57
    $region56: #{tpu_custom_call.1} parent=1 // pred_region
      %73 = dma.done [#allocation6], 2176
    $region57: #{tpu_custom_call.1} parent=1 // pred_fallthru
      _
    %v75 = vld [vmem:[#allocation2] sm:$0xf]
    %v76 = vld [vmem:[#allocation2 + $0x4] sm:$0xf]
    %v77 = vld [vmem:[#allocation2 + $0x8] sm:$0xf]
    %v78 = vld [vmem:[#allocation2 + $0xc] sm:$0xf]
    %v79 = vld [vmem:[#allocation2 + $0x10] sm:$0xf]
    %v80 = vld [vmem:[#allocation2 + $0x14] sm:$0xf]
    %v81 = vld [vmem:[#allocation2 + $0x18] sm:$0xf]
    %v82 = vld [vmem:[#allocation2 + $0x1c] sm:$0xf]
    %v83 = vld [vmem:[#allocation2 + $0x20] sm:$0xf]
    %v84 = vld [vmem:[#allocation2 + $0x24] sm:$0xf]
    %v85 = vld [vmem:[#allocation2 + $0x28] sm:$0xf]
    %v86 = vld [vmem:[#allocation2 + $0x2c] sm:$0xf]
    %v87 = vld [vmem:[#allocation2 + $0x30] sm:$0xf]
    %v88 = vld [vmem:[#allocation2 + $0x34] sm:$0xf]
    %v89 = vld [vmem:[#allocation2 + $0x38] sm:$0xf]
    %v90 = vld [vmem:[#allocation2 + $0x3c] sm:$0xf]
    %v91 = vld [vmem:[#allocation2 + $0x40] sm:$0xf]
    %v92 = vld [vmem:[#allocation2 + $0x44] sm:$0xf]
    %v93 = vld [vmem:[#allocation2 + $0x48] sm:$0xf]
    %v94 = vld [vmem:[#allocation2 + $0x4c] sm:$0xf]
    %v95 = vld [vmem:[#allocation2 + $0x50] sm:$0xf]
    %v96 = vld [vmem:[#allocation2 + $0x54] sm:$0xf]
    %v97 = vld [vmem:[#allocation2 + $0x58] sm:$0xf]
    %v98 = vld [vmem:[#allocation2 + $0x5c] sm:$0xf]
    %v99 = vld [vmem:[#allocation2 + $0x60] sm:$0xf]
    %v100 = vld [vmem:[#allocation2 + $0x64] sm:$0xf]
    %v101 = vld [vmem:[#allocation2 + $0x68] sm:$0xf]
    %v102 = vld [vmem:[#allocation2 + $0x6c] sm:$0xf]
    %v103 = vld [vmem:[#allocation2 + $0x70] sm:$0xf]
    %v104 = vld [vmem:[#allocation2 + $0x74] sm:$0xf]
    %v105 = vld [vmem:[#allocation2 + $0x78] sm:$0xf]
    %v106 = vld [vmem:[#allocation2 + $0x7c] sm:$0xf]
    %v107 = vld [vmem:[%s1] sm:$0xf]
    %v108 = vld [vmem:[%s1 + $0x4] sm:$0xf]
    %v109 = vld [vmem:[%s1 + $0x8] sm:$0xf]
    %v110 = vld [vmem:[%s1 + $0xc] sm:$0xf]
    %v111 = vld [vmem:[%s1 + $0x10] sm:$0xf]
    %v112 = vld [vmem:[%s1 + $0x14] sm:$0xf]
    %v113 = vld [vmem:[%s1 + $0x18] sm:$0xf]
    %v114 = vld [vmem:[%s1 + $0x1c] sm:$0xf]
    %v115 = vld [vmem:[%s1 + $0x20] sm:$0xf]
    %v116 = vld [vmem:[%s1 + $0x24] sm:$0xf]
    %v117 = vld [vmem:[%s1 + $0x28] sm:$0xf]
    %v118 = vld [vmem:[%s1 + $0x2c] sm:$0xf]
    %v119 = vld [vmem:[%s1 + $0x30] sm:$0xf]
    %v120 = vld [vmem:[%s1 + $0x34] sm:$0xf]
    %v121 = vld [vmem:[%s1 + $0x38] sm:$0xf]
    %v122 = vld [vmem:[%s1 + $0x3c] sm:$0xf]
    %v123 = vld [vmem:[%s1 + $0x40] sm:$0xf]
    %v124 = vld [vmem:[%s1 + $0x44] sm:$0xf]
    %v125 = vld [vmem:[%s1 + $0x48] sm:$0xf]
    %v126 = vld [vmem:[%s1 + $0x4c] sm:$0xf]
    %v127 = vld [vmem:[%s1 + $0x50] sm:$0xf]
    %v128 = vld [vmem:[%s1 + $0x54] sm:$0xf]
    %v129 = vld [vmem:[%s1 + $0x58] sm:$0xf]
    %v130 = vld [vmem:[%s1 + $0x5c] sm:$0xf]
    %v131 = vld [vmem:[%s1 + $0x60] sm:$0xf]
    %v132 = vld [vmem:[%s1 + $0x64] sm:$0xf]
    %v133 = vld [vmem:[%s1 + $0x68] sm:$0xf]
    %v134 = vld [vmem:[%s1 + $0x6c] sm:$0xf]
    %v135 = vld [vmem:[%s1 + $0x70] sm:$0xf]
    %v136 = vld [vmem:[%s1 + $0x74] sm:$0xf]
    %v137 = vld [vmem:[%s1 + $0x78] sm:$0xf]
    %v138 = vld [vmem:[%s1 + $0x7c] sm:$0xf]
    %v139 = vld [vmem:[%s1 + $0x80] sm:$0xf]
    %v140 = vld [vmem:[%s1 + $0x84] sm:$0xf]
    %v141 = vld [vmem:[%s1 + $0x88] sm:$0xf]
    %v174 = vunpack.c.l.b16 %v75
    %v175 = vunpack.c.l.b16 %v76
    %v176 = vunpack.c.l.b16 %v77
    %v177 = vunpack.c.l.b16 %v78
    %v178 = vunpack.c.l.b16 %v79
    %v179 = vunpack.c.l.b16 %v80
    %v180 = vunpack.c.l.b16 %v81
    %v181 = vunpack.c.l.b16 %v82
    %v182 = vunpack.c.l.b16 %v83
    %v183 = vunpack.c.l.b16 %v84
    %v184 = vunpack.c.l.b16 %v85
    %v185 = vunpack.c.l.b16 %v86
    %v186 = vunpack.c.l.b16 %v87
    %v187 = vunpack.c.l.b16 %v88
    %v188 = vunpack.c.l.b16 %v89
    %v189 = vunpack.c.l.b16 %v90
    %v190 = vunpack.c.l.b16 %v91
    %v191 = vunpack.c.l.b16 %v92
    %v192 = vunpack.c.l.b16 %v93
    %v193 = vunpack.c.l.b16 %v94
    %v194 = vunpack.c.l.b16 %v95
    %v195 = vunpack.c.l.b16 %v96
    %v196 = vunpack.c.l.b16 %v97
    %v197 = vunpack.c.l.b16 %v98
    %v198 = vunpack.c.l.b16 %v99
    %v199 = vunpack.c.l.b16 %v100
    %v200 = vunpack.c.l.b16 %v101
    %v201 = vunpack.c.l.b16 %v102
    %v202 = vunpack.c.l.b16 %v103
    %v203 = vunpack.c.l.b16 %v104
    %v204 = vunpack.c.l.b16 %v105
    %v205 = vunpack.c.l.b16 %v106
    %v206 = vpack.c.b16 %v175, %v174
    %v207 = vpack.c.b16 %v177, %v176
    %v208 = vpack.c.b16 %v179, %v178
    %v209 = vpack.c.b16 %v181, %v180
    %v210 = vpack.c.b16 %v183, %v182
    %v211 = vpack.c.b16 %v185, %v184
    %v212 = vpack.c.b16 %v187, %v186
    %v213 = vpack.c.b16 %v189, %v188
    %v214 = vpack.c.b16 %v191, %v190
    %v215 = vpack.c.b16 %v193, %v192
    %v216 = vpack.c.b16 %v195, %v194
    %v217 = vpack.c.b16 %v197, %v196
    %v218 = vpack.c.b16 %v199, %v198
    %v219 = vpack.c.b16 %v201, %v200
    %v220 = vpack.c.b16 %v203, %v202
    %v221 = vpack.c.b16 %v205, %v204
    %v273 = vunpack.c.l.b16 %v107
    %v274 = vunpack.c.l.b16 %v108
    %v275 = vunpack.c.l.b16 %v109
    %v276 = vunpack.c.l.b16 %v110
    %v277 = vunpack.c.l.b16 %v111
    %v278 = vunpack.c.l.b16 %v112
    %v279 = vunpack.c.l.b16 %v113
    %v280 = vunpack.c.l.b16 %v114
    %v281 = vunpack.c.l.b16 %v115
    %v282 = vunpack.c.l.b16 %v116
    %v283 = vunpack.c.l.b16 %v117
    %v284 = vunpack.c.l.b16 %v118
    %v285 = vunpack.c.l.b16 %v119
    %v286 = vunpack.c.l.b16 %v120
    %v287 = vunpack.c.l.b16 %v121
    %v288 = vunpack.c.l.b16 %v122
    %v289 = vunpack.c.l.b16 %v123
    %v290 = vunpack.c.l.b16 %v124
    %v291 = vunpack.c.l.b16 %v125
    %v292 = vunpack.c.l.b16 %v126
    %v293 = vunpack.c.l.b16 %v127
    %v294 = vunpack.c.l.b16 %v128
    %v295 = vunpack.c.l.b16 %v129
    %v296 = vunpack.c.l.b16 %v130
    %v297 = vunpack.c.l.b16 %v131
    %v298 = vunpack.c.l.b16 %v132
    %v299 = vunpack.c.l.b16 %v133
    %v300 = vunpack.c.l.b16 %v134
    %v301 = vunpack.c.l.b16 %v135
    %v302 = vunpack.c.l.b16 %v136
    %v303 = vunpack.c.l.b16 %v137
    %v304 = vunpack.c.l.b16 %v138
    %v305 = vunpack.c.l.b16 %v139
    %v306 = vunpack.c.l.b16 %v140
    %v307 = vunpack.c.l.b16 %v141
    %v308 = vpack.c.b16 %v274, %v273
    %v309 = vpack.c.b16 %v276, %v275
    %v310 = vpack.c.b16 %v278, %v277
    %v311 = vpack.c.b16 %v280, %v279
    %v312 = vpack.c.b16 %v282, %v281
    %v313 = vpack.c.b16 %v284, %v283
    %v314 = vpack.c.b16 %v286, %v285
    %v315 = vpack.c.b16 %v288, %v287
    %v316 = vpack.c.b16 %v290, %v289
    %v317 = vpack.c.b16 %v292, %v291
    %v318 = vpack.c.b16 %v294, %v293
    %v319 = vpack.c.b16 %v296, %v295
    %v320 = vpack.c.b16 %v298, %v297
    %v321 = vpack.c.b16 %v300, %v299
    %v322 = vpack.c.b16 %v302, %v301
    %v323 = vpack.c.b16 %v304, %v303
    %v324 = vpack.c.b16 %v306, %v305
    %v325 = vpack.c.b16 %v307, %v307
    %344 = vmatpush.bf16.xpose.msra.mxu0 %v315
    %345 = vmatpush.bf16.xpose.msra.mxu0 %v314
    %346 = vmatpush.bf16.xpose.msra.mxu0 %v313
    %347 = vmatpush.bf16.xpose.msra.mxu0 %v312
    %348 = vmatpush.bf16.xpose.msra.mxu0 %v311
    %349 = vmatpush.bf16.xpose.msra.mxu0 %v310
    %350 = vmatpush.bf16.xpose.msra.mxu0 %v309
    %351 = vmatpush.bf16.xpose.msra.mxu0 %v308
    %352 = vmatmul.bf16.gmra.mxu0 %v206
    %v353 = vpop.f32.mrf.mxu0
    %v354 = vadd.f32 0.0, %v353
    %v355 = vpop.f32.mrf.mxu0
    %v356 = vadd.f32 0.0, %v355
    %357 = vmatmul.bf16.gmra.mxu0 %v207
    %v358 = vpop.f32.mrf.mxu0
    %v359 = vadd.f32 0.0, %v358
    %v360 = vpop.f32.mrf.mxu0
    %v361 = vadd.f32 0.0, %v360
    %362 = vmatmul.bf16.gmra.mxu0 %v208
    %v363 = vpop.f32.mrf.mxu0
    %v364 = vadd.f32 0.0, %v363
    %v365 = vpop.f32.mrf.mxu0
    %v366 = vadd.f32 0.0, %v365
    %367 = vmatmul.bf16.gmra.mxu0 %v209
    %v368 = vpop.f32.mrf.mxu0
    %v369 = vadd.f32 0.0, %v368
    %v370 = vpop.f32.mrf.mxu0
    %v371 = vadd.f32 0.0, %v370
    %372 = vmatmul.bf16.gmra.mxu0 %v210
    %v373 = vpop.f32.mrf.mxu0
    %v374 = vadd.f32 0.0, %v373
    %v375 = vpop.f32.mrf.mxu0
    %v376 = vadd.f32 0.0, %v375
    %377 = vmatmul.bf16.gmra.mxu0 %v211
    %v378 = vpop.f32.mrf.mxu0
    %v379 = vadd.f32 0.0, %v378
    %v380 = vpop.f32.mrf.mxu0
    %v381 = vadd.f32 0.0, %v380
    %382 = vmatmul.bf16.gmra.mxu0 %v212
    %v383 = vpop.f32.mrf.mxu0
    %v384 = vadd.f32 0.0, %v383
    %v385 = vpop.f32.mrf.mxu0
    %v386 = vadd.f32 0.0, %v385
    %387 = vmatmul.bf16.gmra.mxu0 %v213
    %v388 = vpop.f32.mrf.mxu0
    %v389 = vadd.f32 0.0, %v388
    %v390 = vpop.f32.mrf.mxu0
    %v391 = vadd.f32 0.0, %v390
    %392 = vmatmul.bf16.gmra.mxu0 %v214
    %v393 = vpop.f32.mrf.mxu0
    %v394 = vadd.f32 0.0, %v393
    %v395 = vpop.f32.mrf.mxu0
    %v396 = vadd.f32 0.0, %v395
    %397 = vmatmul.bf16.gmra.mxu0 %v215
    %v398 = vpop.f32.mrf.mxu0
    %v399 = vadd.f32 0.0, %v398
    %v400 = vpop.f32.mrf.mxu0
    %v401 = vadd.f32 0.0, %v400
    %402 = vmatmul.bf16.gmra.mxu0 %v216
    %v403 = vpop.f32.mrf.mxu0
    %v404 = vadd.f32 0.0, %v403
    %v405 = vpop.f32.mrf.mxu0
    %v406 = vadd.f32 0.0, %v405
    %407 = vmatmul.bf16.gmra.mxu0 %v217
    %v408 = vpop.f32.mrf.mxu0
    %v409 = vadd.f32 0.0, %v408
    %v410 = vpop.f32.mrf.mxu0
    %v411 = vadd.f32 0.0, %v410
    %412 = vmatmul.bf16.gmra.mxu0 %v218
    %v413 = vpop.f32.mrf.mxu0
    %v414 = vadd.f32 0.0, %v413
    %v415 = vpop.f32.mrf.mxu0
    %v416 = vadd.f32 0.0, %v415
    %417 = vmatmul.bf16.gmra.mxu0 %v219
    %v418 = vpop.f32.mrf.mxu0
    %v419 = vadd.f32 0.0, %v418
    %v420 = vpop.f32.mrf.mxu0
    %v421 = vadd.f32 0.0, %v420
    %422 = vmatmul.bf16.gmra.mxu0 %v220
    %v423 = vpop.f32.mrf.mxu0
    %v424 = vadd.f32 0.0, %v423
    %v425 = vpop.f32.mrf.mxu0
    %v426 = vadd.f32 0.0, %v425
    %427 = vmatmul.bf16.gmra.mxu0 %v221
    %v428 = vpop.f32.mrf.mxu0
    %v429 = vadd.f32 0.0, %v428
    %v430 = vpop.f32.mrf.mxu0
    %v431 = vadd.f32 0.0, %v430
    %432 = vdwg.mxu0
    %433 = vmatpush.bf16.xpose.msra.mxu0 %v323
    %434 = vmatpush.bf16.xpose.msra.mxu0 %v322
    %435 = vmatpush.bf16.xpose.msra.mxu0 %v321
    %436 = vmatpush.bf16.xpose.msra.mxu0 %v320
    %437 = vmatpush.bf16.xpose.msra.mxu0 %v319
    %438 = vmatpush.bf16.xpose.msra.mxu0 %v318
    %439 = vmatpush.bf16.xpose.msra.mxu0 %v317
    %440 = vmatpush.bf16.xpose.msra.mxu0 %v316
    %441 = vmatmul.bf16.gmra.mxu0 %v206
    %v442 = vpop.f32.mrf.mxu0
    %v443 = vadd.f32 0.0, %v442
    %v444 = vpop.f32.mrf.mxu0
    %v445 = vadd.f32 0.0, %v444
    %446 = vmatmul.bf16.gmra.mxu0 %v207
    %v447 = vpop.f32.mrf.mxu0
    %v448 = vadd.f32 0.0, %v447
    %v449 = vpop.f32.mrf.mxu0
    %v450 = vadd.f32 0.0, %v449
    %451 = vmatmul.bf16.gmra.mxu0 %v208
    %v452 = vpop.f32.mrf.mxu0
    %v453 = vadd.f32 0.0, %v452
    %v454 = vpop.f32.mrf.mxu0
    %v455 = vadd.f32 0.0, %v454
    %456 = vmatmul.bf16.gmra.mxu0 %v209
    %v457 = vpop.f32.mrf.mxu0
    %v458 = vadd.f32 0.0, %v457
    %v459 = vpop.f32.mrf.mxu0
    %v460 = vadd.f32 0.0, %v459
    %461 = vmatmul.bf16.gmra.mxu0 %v210
    %v462 = vpop.f32.mrf.mxu0
    %v463 = vadd.f32 0.0, %v462
    %v464 = vpop.f32.mrf.mxu0
    %v465 = vadd.f32 0.0, %v464
    %466 = vmatmul.bf16.gmra.mxu0 %v211
    %v467 = vpop.f32.mrf.mxu0
    %v468 = vadd.f32 0.0, %v467
    %v469 = vpop.f32.mrf.mxu0
    %v470 = vadd.f32 0.0, %v469
    %471 = vmatmul.bf16.gmra.mxu0 %v212
    %v472 = vpop.f32.mrf.mxu0
    %v473 = vadd.f32 0.0, %v472
    %v474 = vpop.f32.mrf.mxu0
    %v475 = vadd.f32 0.0, %v474
    %476 = vmatmul.bf16.gmra.mxu0 %v213
    %v477 = vpop.f32.mrf.mxu0
    %v478 = vadd.f32 0.0, %v477
    %v479 = vpop.f32.mrf.mxu0
    %v480 = vadd.f32 0.0, %v479
    %481 = vmatmul.bf16.gmra.mxu0 %v214
    %v482 = vpop.f32.mrf.mxu0
    %v483 = vadd.f32 0.0, %v482
    %v484 = vpop.f32.mrf.mxu0
    %v485 = vadd.f32 0.0, %v484
    %486 = vmatmul.bf16.gmra.mxu0 %v215
    %v487 = vpop.f32.mrf.mxu0
    %v488 = vadd.f32 0.0, %v487
    %v489 = vpop.f32.mrf.mxu0
    %v490 = vadd.f32 0.0, %v489
    %491 = vmatmul.bf16.gmra.mxu0 %v216
    %v492 = vpop.f32.mrf.mxu0
    %v493 = vadd.f32 0.0, %v492
    %v494 = vpop.f32.mrf.mxu0
    %v495 = vadd.f32 0.0, %v494
    %496 = vmatmul.bf16.gmra.mxu0 %v217
    %v497 = vpop.f32.mrf.mxu0
    %v498 = vadd.f32 0.0, %v497
    %v499 = vpop.f32.mrf.mxu0
    %v500 = vadd.f32 0.0, %v499
    %501 = vmatmul.bf16.gmra.mxu0 %v218
    %v502 = vpop.f32.mrf.mxu0
    %v503 = vadd.f32 0.0, %v502
    %v504 = vpop.f32.mrf.mxu0
    %v505 = vadd.f32 0.0, %v504
    %506 = vmatmul.bf16.gmra.mxu0 %v219
    %v507 = vpop.f32.mrf.mxu0
    %v508 = vadd.f32 0.0, %v507
    %v509 = vpop.f32.mrf.mxu0
    %v510 = vadd.f32 0.0, %v509
    %511 = vmatmul.bf16.gmra.mxu0 %v220
    %v512 = vpop.f32.mrf.mxu0
    %v513 = vadd.f32 0.0, %v512
    %v514 = vpop.f32.mrf.mxu0
    %v515 = vadd.f32 0.0, %v514
    %516 = vmatmul.bf16.gmra.mxu0 %v221
    %v517 = vpop.f32.mrf.mxu0
    %v518 = vadd.f32 0.0, %v517
    %v519 = vpop.f32.mrf.mxu0
    %v520 = vadd.f32 0.0, %v519
    %521 = vdwg.mxu0
    %522 = vmatpush.bf16.xpose.msra.mxu0 0
    %523 = vmatpush.bf16.xpose.msra.mxu0 0
    %524 = vmatpush.bf16.xpose.msra.mxu0 0
    %525 = vmatpush.bf16.xpose.msra.mxu0 0
    %526 = vmatpush.bf16.xpose.msra.mxu0 0
    %527 = vmatpush.bf16.xpose.msra.mxu0 0
    %528 = vmatpush.bf16.xpose.msra.mxu0 %v325
    %529 = vmatpush.bf16.xpose.msra.mxu0 %v324
    %530 = vmatmul.bf16.gmra.mxu0 %v206
    %v531 = vpop.f32.mrf.mxu0
    %v532 = vadd.f32 0.0, %v531
    %v533 = vpop.f32.mrf.mxu0
    %v534 = vadd.f32 0.0, %v533
    %535 = vmatmul.bf16.gmra.mxu0 %v207
    %v536 = vpop.f32.mrf.mxu0
    %v537 = vadd.f32 0.0, %v536
    %v538 = vpop.f32.mrf.mxu0
    %v539 = vadd.f32 0.0, %v538
    %540 = vmatmul.bf16.gmra.mxu0 %v208
    %v541 = vpop.f32.mrf.mxu0
    %v542 = vadd.f32 0.0, %v541
    %v543 = vpop.f32.mrf.mxu0
    %v544 = vadd.f32 0.0, %v543
    %545 = vmatmul.bf16.gmra.mxu0 %v209
    %v546 = vpop.f32.mrf.mxu0
    %v547 = vadd.f32 0.0, %v546
    %v548 = vpop.f32.mrf.mxu0
    %v549 = vadd.f32 0.0, %v548
    %550 = vmatmul.bf16.gmra.mxu0 %v210
    %v551 = vpop.f32.mrf.mxu0
    %v552 = vadd.f32 0.0, %v551
    %v553 = vpop.f32.mrf.mxu0
    %v554 = vadd.f32 0.0, %v553
    %555 = vmatmul.bf16.gmra.mxu0 %v211
    %v556 = vpop.f32.mrf.mxu0
    %v557 = vadd.f32 0.0, %v556
    %v558 = vpop.f32.mrf.mxu0
    %v559 = vadd.f32 0.0, %v558
    %560 = vmatmul.bf16.gmra.mxu0 %v212
    %v561 = vpop.f32.mrf.mxu0
    %v562 = vadd.f32 0.0, %v561
    %v563 = vpop.f32.mrf.mxu0
    %v564 = vadd.f32 0.0, %v563
    %565 = vmatmul.bf16.gmra.mxu0 %v213
    %v566 = vpop.f32.mrf.mxu0
    %v567 = vadd.f32 0.0, %v566
    %v568 = vpop.f32.mrf.mxu0
    %v569 = vadd.f32 0.0, %v568
    %570 = vmatmul.bf16.gmra.mxu0 %v214
    %v571 = vpop.f32.mrf.mxu0
    %v572 = vadd.f32 0.0, %v571
    %v573 = vpop.f32.mrf.mxu0
    %v574 = vadd.f32 0.0, %v573
    %575 = vmatmul.bf16.gmra.mxu0 %v215
    %v576 = vpop.f32.mrf.mxu0
    %v577 = vadd.f32 0.0, %v576
    %v578 = vpop.f32.mrf.mxu0
    %v579 = vadd.f32 0.0, %v578
    %580 = vmatmul.bf16.gmra.mxu0 %v216
    %v581 = vpop.f32.mrf.mxu0
    %v582 = vadd.f32 0.0, %v581
    %v583 = vpop.f32.mrf.mxu0
    %v584 = vadd.f32 0.0, %v583
    %585 = vmatmul.bf16.gmra.mxu0 %v217
    %v586 = vpop.f32.mrf.mxu0
    %v587 = vadd.f32 0.0, %v586
    %v588 = vpop.f32.mrf.mxu0
    %v589 = vadd.f32 0.0, %v588
    %590 = vmatmul.bf16.gmra.mxu0 %v218
    %v591 = vpop.f32.mrf.mxu0
    %v592 = vadd.f32 0.0, %v591
    %v593 = vpop.f32.mrf.mxu0
    %v594 = vadd.f32 0.0, %v593
    %595 = vmatmul.bf16.gmra.mxu0 %v219
    %v596 = vpop.f32.mrf.mxu0
    %v597 = vadd.f32 0.0, %v596
    %v598 = vpop.f32.mrf.mxu0
    %v599 = vadd.f32 0.0, %v598
    %600 = vmatmul.bf16.gmra.mxu0 %v220
    %v601 = vpop.f32.mrf.mxu0
    %v602 = vadd.f32 0.0, %v601
    %v603 = vpop.f32.mrf.mxu0
    %v604 = vadd.f32 0.0, %v603
    %605 = vmatmul.bf16.gmra.mxu0 %v221
    %v606 = vpop.f32.mrf.mxu0
    %v607 = vadd.f32 0.0, %v606
    %v608 = vpop.f32.mrf.mxu0
    %v609 = vadd.f32 0.0, %v608
    %610 = vdwg.mxu0
    %v611 = vld [vmem:[%s2] sm:$0x1]
    %v613 = vperm.slane %v611, 0
    %v615 = vadd.f32 %v532, %v613
    %v616 = vadd.f32 %v534, %v613
    %v617 = vadd.f32 %v537, %v613
    %v618 = vadd.f32 %v539, %v613
    %v619 = vadd.f32 %v542, %v613
    %v620 = vadd.f32 %v544, %v613
    %v621 = vadd.f32 %v547, %v613
    %v622 = vadd.f32 %v549, %v613
    %v623 = vadd.f32 %v552, %v613
    %v624 = vadd.f32 %v554, %v613
    %v625 = vadd.f32 %v557, %v613
    %v626 = vadd.f32 %v559, %v613
    %v627 = vadd.f32 %v562, %v613
    %v628 = vadd.f32 %v564, %v613
    %v629 = vadd.f32 %v567, %v613
    %v630 = vadd.f32 %v569, %v613
    %v631 = vadd.f32 %v572, %v613
    %v632 = vadd.f32 %v574, %v613
    %v633 = vadd.f32 %v577, %v613
    %v634 = vadd.f32 %v579, %v613
    %v635 = vadd.f32 %v582, %v613
    %v636 = vadd.f32 %v584, %v613
    %v637 = vadd.f32 %v587, %v613
    %v638 = vadd.f32 %v589, %v613
    %v639 = vadd.f32 %v592, %v613
    %v640 = vadd.f32 %v594, %v613
    %v641 = vadd.f32 %v597, %v613
    %v642 = vadd.f32 %v599, %v613
    %v643 = vadd.f32 %v602, %v613
    %v644 = vadd.f32 %v604, %v613
    %v645 = vadd.f32 %v607, %v613
    %v646 = vadd.f32 %v609, %v613
    %v647 = vmax.f32 %v615, 0.0
    %v648 = vmax.f32 %v616, 0.0
    %v649 = vmax.f32 %v617, 0.0
    %v650 = vmax.f32 %v618, 0.0
    %v651 = vmax.f32 %v619, 0.0
    %v652 = vmax.f32 %v620, 0.0
    %v653 = vmax.f32 %v621, 0.0
    %v654 = vmax.f32 %v622, 0.0
    %v655 = vmax.f32 %v623, 0.0
    %v656 = vmax.f32 %v624, 0.0
    %v657 = vmax.f32 %v625, 0.0
    %v658 = vmax.f32 %v626, 0.0
    %v659 = vmax.f32 %v627, 0.0
    %v660 = vmax.f32 %v628, 0.0
    %v661 = vmax.f32 %v629, 0.0
    %v662 = vmax.f32 %v630, 0.0
    %v663 = vmax.f32 %v631, 0.0
    %v664 = vmax.f32 %v632, 0.0
    %v665 = vmax.f32 %v633, 0.0
    %v666 = vmax.f32 %v634, 0.0
    %v667 = vmax.f32 %v635, 0.0
    %v668 = vmax.f32 %v636, 0.0
    %v669 = vmax.f32 %v637, 0.0
    %v670 = vmax.f32 %v638, 0.0
    %v671 = vmax.f32 %v639, 0.0
    %v672 = vmax.f32 %v640, 0.0
    %v673 = vmax.f32 %v641, 0.0
    %v674 = vmax.f32 %v642, 0.0
    %v675 = vmax.f32 %v643, 0.0
    %v676 = vmax.f32 %v644, 0.0
    %v677 = vmax.f32 %v645, 0.0
    %v678 = vmax.f32 %v646, 0.0
    %v679 = vld [vmem:[%s3] sm:$0xff]
    %v680 = vld [vmem:[%s4] sm:$0x1]
    %v682 = vperm.slane %v680, 0
    %vm684 = vcmask 130048
    %v686 = vsel %vm684, %v647, 0
    %v689 = vsel %vm684, %v648, 0
    %v692 = vsel %vm684, %v649, 0
    %v695 = vsel %vm684, %v650, 0
    %v698 = vsel %vm684, %v651, 0
    %v701 = vsel %vm684, %v652, 0
    %v704 = vsel %vm684, %v653, 0
    %v707 = vsel %vm684, %v654, 0
    %v710 = vsel %vm684, %v655, 0
    %v713 = vsel %vm684, %v656, 0
    %v716 = vsel %vm684, %v657, 0
    %v719 = vsel %vm684, %v658, 0
    %v722 = vsel %vm684, %v659, 0
    %v725 = vsel %vm684, %v660, 0
    %v728 = vsel %vm684, %v661, 0
    %v731 = vsel %vm684, %v662, 0
    %v734 = vsel %vm684, %v663, 0
    %v737 = vsel %vm684, %v664, 0
    %v740 = vsel %vm684, %v665, 0
    %v743 = vsel %vm684, %v666, 0
    %v746 = vsel %vm684, %v667, 0
    %v749 = vsel %vm684, %v668, 0
    %v752 = vsel %vm684, %v669, 0
    %v755 = vsel %vm684, %v670, 0
    %v758 = vsel %vm684, %v671, 0
    %v761 = vsel %vm684, %v672, 0
    %v764 = vsel %vm684, %v673, 0
    %v767 = vsel %vm684, %v674, 0
    %v770 = vsel %vm684, %v675, 0
    %v773 = vsel %vm684, %v676, 0
    %v776 = vsel %vm684, %v677, 0
    %v779 = vsel %vm684, %v678, 0
    %v782 = vsel %vm684, %v679, 0
    %784 = vmatpush.xpose.msra.mxu0 0.0
    %785 = vmatpush.xpose.msra.mxu0 0.0
    %786 = vmatpush.xpose.msra.mxu0 0.0
    %787 = vmatpush.xpose.msra.mxu0 0.0
    %788 = vmatpush.xpose.msra.mxu0 0.0
    %789 = vmatpush.xpose.msra.mxu0 0.0
    %790 = vmatpush.xpose.msra.mxu0 0.0
    %791 = vmatpush.xpose.msra.mxu0 0.0
    %792 = vmatpush.xpose.msra.mxu0 0.0
    %793 = vmatpush.xpose.msra.mxu0 0.0
    %794 = vmatpush.xpose.msra.mxu0 0.0
    %795 = vmatpush.xpose.msra.mxu0 0.0
    %796 = vmatpush.xpose.msra.mxu0 0.0
    %797 = vmatpush.xpose.msra.mxu0 0.0
    %798 = vmatpush.xpose.msra.mxu0 0.0
    %799 = vmatpush.xpose.msra.mxu0 %v782
    %800 = vmatmul.f32.gmra.mxu0 %v686
    %v801 = vpop.f32.mrf.mxu0
    %v802 = vadd.f32 %v682, %v801
    %803 = vmatmul.f32.gmra.mxu0 %v689
    %v804 = vpop.f32.mrf.mxu0
    %v805 = vadd.f32 %v682, %v804
    %806 = vmatmul.f32.gmra.mxu0 %v692
    %v807 = vpop.f32.mrf.mxu0
    %v808 = vadd.f32 %v682, %v807
    %809 = vmatmul.f32.gmra.mxu0 %v695
    %v810 = vpop.f32.mrf.mxu0
    %v811 = vadd.f32 %v682, %v810
    %812 = vmatmul.f32.gmra.mxu0 %v698
    %v813 = vpop.f32.mrf.mxu0
    %v814 = vadd.f32 %v682, %v813
    %815 = vmatmul.f32.gmra.mxu0 %v701
    %v816 = vpop.f32.mrf.mxu0
    %v817 = vadd.f32 %v682, %v816
    %818 = vmatmul.f32.gmra.mxu0 %v704
    %v819 = vpop.f32.mrf.mxu0
    %v820 = vadd.f32 %v682, %v819
    %821 = vmatmul.f32.gmra.mxu0 %v707
    %v822 = vpop.f32.mrf.mxu0
    %v823 = vadd.f32 %v682, %v822
    %824 = vmatmul.f32.gmra.mxu0 %v710
    %v825 = vpop.f32.mrf.mxu0
    %v826 = vadd.f32 %v682, %v825
    %827 = vmatmul.f32.gmra.mxu0 %v713
    %v828 = vpop.f32.mrf.mxu0
    %v829 = vadd.f32 %v682, %v828
    %830 = vmatmul.f32.gmra.mxu0 %v716
    %v831 = vpop.f32.mrf.mxu0
    %v832 = vadd.f32 %v682, %v831
    %833 = vmatmul.f32.gmra.mxu0 %v719
    %v834 = vpop.f32.mrf.mxu0
    %v835 = vadd.f32 %v682, %v834
    %836 = vmatmul.f32.gmra.mxu0 %v722
    %v837 = vpop.f32.mrf.mxu0
    %v838 = vadd.f32 %v682, %v837
    %839 = vmatmul.f32.gmra.mxu0 %v725
    %v840 = vpop.f32.mrf.mxu0
    %v841 = vadd.f32 %v682, %v840
    %842 = vmatmul.f32.gmra.mxu0 %v728
    %v843 = vpop.f32.mrf.mxu0
    %v844 = vadd.f32 %v682, %v843
    %845 = vmatmul.f32.gmra.mxu0 %v731
    %v846 = vpop.f32.mrf.mxu0
    %v847 = vadd.f32 %v682, %v846
    %848 = vmatmul.f32.gmra.mxu0 %v734
    %v849 = vpop.f32.mrf.mxu0
    %v850 = vadd.f32 %v682, %v849
    %851 = vmatmul.f32.gmra.mxu0 %v737
    %v852 = vpop.f32.mrf.mxu0
    %v853 = vadd.f32 %v682, %v852
    %854 = vmatmul.f32.gmra.mxu0 %v740
    %v855 = vpop.f32.mrf.mxu0
    %v856 = vadd.f32 %v682, %v855
    %857 = vmatmul.f32.gmra.mxu0 %v743
    %v858 = vpop.f32.mrf.mxu0
    %v859 = vadd.f32 %v682, %v858
    %860 = vmatmul.f32.gmra.mxu0 %v746
    %v861 = vpop.f32.mrf.mxu0
    %v862 = vadd.f32 %v682, %v861
    %863 = vmatmul.f32.gmra.mxu0 %v749
    %v864 = vpop.f32.mrf.mxu0
    %v865 = vadd.f32 %v682, %v864
    %866 = vmatmul.f32.gmra.mxu0 %v752
    %v867 = vpop.f32.mrf.mxu0
    %v868 = vadd.f32 %v682, %v867
    %869 = vmatmul.f32.gmra.mxu0 %v755
    %v870 = vpop.f32.mrf.mxu0
    %v871 = vadd.f32 %v682, %v870
    %872 = vmatmul.f32.gmra.mxu0 %v758
    %v873 = vpop.f32.mrf.mxu0
    %v874 = vadd.f32 %v682, %v873
    %875 = vmatmul.f32.gmra.mxu0 %v761
    %v876 = vpop.f32.mrf.mxu0
    %v877 = vadd.f32 %v682, %v876
    %878 = vmatmul.f32.gmra.mxu0 %v764
    %v879 = vpop.f32.mrf.mxu0
    %v880 = vadd.f32 %v682, %v879
    %881 = vmatmul.f32.gmra.mxu0 %v767
    %v882 = vpop.f32.mrf.mxu0
    %v883 = vadd.f32 %v682, %v882
    %884 = vmatmul.f32.gmra.mxu0 %v770
    %v885 = vpop.f32.mrf.mxu0
    %v886 = vadd.f32 %v682, %v885
    %887 = vmatmul.f32.gmra.mxu0 %v773
    %v888 = vpop.f32.mrf.mxu0
    %v889 = vadd.f32 %v682, %v888
    %890 = vmatmul.f32.gmra.mxu0 %v776
    %v891 = vpop.f32.mrf.mxu0
    %v892 = vadd.f32 %v682, %v891
    %893 = vmatmul.f32.gmra.mxu0 %v779
    %v894 = vpop.f32.mrf.mxu0
    %v895 = vadd.f32 %v682, %v894
    %896 = vdwg.mxu0
    %v897 = vld [vmem:[%s5] sm:$0xff]
    %899 = vst [vmem:[#allocation1] ss:$2 sm:$0xff] %v897
    %v900 = vld.sshfl [vmem:[#allocation1] sm:$0xff pattern:$0x75316420]
    %v901 = vld.sshfl [vmem:[#allocation1 + $0x8] sm:$0xff pattern:$0x75316420]
    %904 = vmatpush.msra.mxu0 %v847
    %905 = vmatpush.msra.mxu0 %v844
    %906 = vmatpush.msra.mxu0 %v841
    %907 = vmatpush.msra.mxu0 %v838
    %908 = vmatpush.msra.mxu0 %v835
    %909 = vmatpush.msra.mxu0 %v832
    %910 = vmatpush.msra.mxu0 %v829
    %911 = vmatpush.msra.mxu0 %v826
    %912 = vmatpush.msra.mxu0 %v823
    %913 = vmatpush.msra.mxu0 %v820
    %914 = vmatpush.msra.mxu0 %v817
    %915 = vmatpush.msra.mxu0 %v814
    %916 = vmatpush.msra.mxu0 %v811
    %917 = vmatpush.msra.mxu0 %v808
    %918 = vmatpush.msra.mxu0 %v805
    %919 = vmatpush.msra.mxu0 %v802
    %920 = vmatmul.f32.gmra.mxu0 %v900
    %v921 = vpop.f32.mrf.mxu0
    %v922 = vadd.f32 0.0, %v921
    %923 = vdwg.mxu0
    %924 = vmatpush.msra.mxu0 %v895
    %925 = vmatpush.msra.mxu0 %v892
    %926 = vmatpush.msra.mxu0 %v889
    %927 = vmatpush.msra.mxu0 %v886
    %928 = vmatpush.msra.mxu0 %v883
    %929 = vmatpush.msra.mxu0 %v880
    %930 = vmatpush.msra.mxu0 %v877
    %931 = vmatpush.msra.mxu0 %v874
    %932 = vmatpush.msra.mxu0 %v871
    %933 = vmatpush.msra.mxu0 %v868
    %934 = vmatpush.msra.mxu0 %v865
    %935 = vmatpush.msra.mxu0 %v862
    %936 = vmatpush.msra.mxu0 %v859
    %937 = vmatpush.msra.mxu0 %v856
    %938 = vmatpush.msra.mxu0 %v853
    %939 = vmatpush.msra.mxu0 %v850
    %940 = vmatmul.f32.gmra.mxu0 %v901
    %v941 = vpop.f32.mrf.mxu0
    %v942 = vadd.f32 %v922, %v941
    %943 = vdwg.mxu0
    %v944 = vld [vmem:[%s6] sm:$0xff]
    %v945 = vld [vmem:[%s6 + $0x8] sm:$0xff]
    %v946 = vld [vmem:[%s6 + $0x10] sm:$0xff]
    %v947 = vld [vmem:[%s6 + $0x18] sm:$0xff]
    %v948 = vld [vmem:[%s6 + $0x20] sm:$0xff]
    %v949 = vld [vmem:[%s6 + $0x28] sm:$0xff]
    %v950 = vld [vmem:[%s6 + $0x30] sm:$0xff]
    %v951 = vld [vmem:[%s6 + $0x38] sm:$0xff]
    %v952 = vld [vmem:[%s6 + $0x40] sm:$0xff]
    %v953 = vld [vmem:[%s6 + $0x48] sm:$0xff]
    %v954 = vld [vmem:[%s6 + $0x50] sm:$0xff]
    %v955 = vld [vmem:[%s6 + $0x58] sm:$0xff]
    %v956 = vld [vmem:[%s6 + $0x60] sm:$0xff]
    %v957 = vld [vmem:[%s6 + $0x68] sm:$0xff]
    %v958 = vld [vmem:[%s6 + $0x70] sm:$0xff]
    %v959 = vld [vmem:[%s6 + $0x78] sm:$0xff]
    %v960 = vld [vmem:[%s6 + $0x80] sm:$0xff]
    %v961 = vld [vmem:[%s6 + $0x88] sm:$0xff]
    %v962 = vld [vmem:[%s6 + $0x90] sm:$0xff]
    %v963 = vld [vmem:[%s6 + $0x98] sm:$0xff]
    %v964 = vld [vmem:[%s6 + $0xa0] sm:$0xff]
    %v965 = vld [vmem:[%s6 + $0xa8] sm:$0xff]
    %v966 = vld [vmem:[%s6 + $0xb0] sm:$0xff]
    %v967 = vld [vmem:[%s6 + $0xb8] sm:$0xff]
    %v968 = vld [vmem:[%s6 + $0xc0] sm:$0xff]
    %v969 = vld [vmem:[%s6 + $0xc8] sm:$0xff]
    %v970 = vld [vmem:[%s6 + $0xd0] sm:$0xff]
    %v971 = vld [vmem:[%s6 + $0xd8] sm:$0xff]
    %v972 = vld [vmem:[%s6 + $0xe0] sm:$0xff]
    %v973 = vld [vmem:[%s6 + $0xe8] sm:$0xff]
    %v974 = vld [vmem:[%s6 + $0xf0] sm:$0xff]
    %v975 = vld [vmem:[%s6 + $0xf8] sm:$0xff]
    %vm976 = vcmask 31744
    %v978 = vsel %vm976, %v944, 0
    %v981 = vsel %vm976, %v945, 0
    %v984 = vsel %vm976, %v946, 0
    %v987 = vsel %vm976, %v947, 0
    %v990 = vsel %vm976, %v948, 0
    %v993 = vsel %vm976, %v949, 0
    %v996 = vsel %vm976, %v950, 0
    %v999 = vsel %vm976, %v951, 0
    %v1002 = vsel %vm976, %v952, 0
    %v1005 = vsel %vm976, %v953, 0
    %v1008 = vsel %vm976, %v954, 0
    %v1011 = vsel %vm976, %v955, 0
    %v1014 = vsel %vm976, %v956, 0
    %v1017 = vsel %vm976, %v957, 0
    %v1020 = vsel %vm976, %v958, 0
    %v1023 = vsel %vm976, %v959, 0
    %v1026 = vsel %vm976, %v960, 0
    %v1029 = vsel %vm976, %v961, 0
    %v1032 = vsel %vm976, %v962, 0
    %v1035 = vsel %vm976, %v963, 0
    %v1038 = vsel %vm976, %v964, 0
    %v1041 = vsel %vm976, %v965, 0
    %v1044 = vsel %vm976, %v966, 0
    %v1047 = vsel %vm976, %v967, 0
    %v1050 = vsel %vm976, %v968, 0
    %v1053 = vsel %vm976, %v969, 0
    %v1056 = vsel %vm976, %v970, 0
    %v1059 = vsel %vm976, %v971, 0
    %v1062 = vsel %vm976, %v972, 0
    %v1065 = vsel %vm976, %v973, 0
    %v1068 = vsel %vm976, %v974, 0
    %v1071 = vsel %vm976, %v975, 0
    %vm1073 = vcmask 1043456
    %v1075 = vsel %vm1073, %v942, 0
    %1077 = vmatpush.msra.mxu0 0.0
    %1078 = vmatpush.msra.mxu0 0.0
    %1079 = vmatpush.msra.mxu0 0.0
    %1080 = vmatpush.msra.mxu0 0.0
    %1081 = vmatpush.msra.mxu0 0.0
    %1082 = vmatpush.msra.mxu0 0.0
    %1083 = vmatpush.msra.mxu0 0.0
    %1084 = vmatpush.msra.mxu0 0.0
    %1085 = vmatpush.msra.mxu0 0.0
    %1086 = vmatpush.msra.mxu0 0.0
    %1087 = vmatpush.msra.mxu0 0.0
    %1088 = vmatpush.msra.mxu0 0.0
    %1089 = vmatpush.msra.mxu0 0.0
    %1090 = vmatpush.msra.mxu0 0.0
    %1091 = vmatpush.msra.mxu0 0.0
    %1092 = vmatpush.msra.mxu0 %v1075
    %1093 = vmatmul.f32.gmra.mxu0 %v978
    %v1094 = vpop.f32.mrf.mxu0
    %v1095 = vadd.f32 0.0, %v1094
    %1096 = vmatmul.f32.gmra.mxu0 %v981
    %v1097 = vpop.f32.mrf.mxu0
    %v1098 = vadd.f32 0.0, %v1097
    %1099 = vmatmul.f32.gmra.mxu0 %v984
    %v1100 = vpop.f32.mrf.mxu0
    %v1101 = vadd.f32 0.0, %v1100
    %1102 = vmatmul.f32.gmra.mxu0 %v987
    %v1103 = vpop.f32.mrf.mxu0
    %v1104 = vadd.f32 0.0, %v1103
    %1105 = vmatmul.f32.gmra.mxu0 %v990
    %v1106 = vpop.f32.mrf.mxu0
    %v1107 = vadd.f32 0.0, %v1106
    %1108 = vmatmul.f32.gmra.mxu0 %v993
    %v1109 = vpop.f32.mrf.mxu0
    %v1110 = vadd.f32 0.0, %v1109
    %1111 = vmatmul.f32.gmra.mxu0 %v996
    %v1112 = vpop.f32.mrf.mxu0
    %v1113 = vadd.f32 0.0, %v1112
    %1114 = vmatmul.f32.gmra.mxu0 %v999
    %v1115 = vpop.f32.mrf.mxu0
    %v1116 = vadd.f32 0.0, %v1115
    %1117 = vmatmul.f32.gmra.mxu0 %v1002
    %v1118 = vpop.f32.mrf.mxu0
    %v1119 = vadd.f32 0.0, %v1118
    %1120 = vmatmul.f32.gmra.mxu0 %v1005
    %v1121 = vpop.f32.mrf.mxu0
    %v1122 = vadd.f32 0.0, %v1121
    %1123 = vmatmul.f32.gmra.mxu0 %v1008
    %v1124 = vpop.f32.mrf.mxu0
    %v1125 = vadd.f32 0.0, %v1124
    %1126 = vmatmul.f32.gmra.mxu0 %v1011
    %v1127 = vpop.f32.mrf.mxu0
    %v1128 = vadd.f32 0.0, %v1127
    %1129 = vmatmul.f32.gmra.mxu0 %v1014
    %v1130 = vpop.f32.mrf.mxu0
    %v1131 = vadd.f32 0.0, %v1130
    %1132 = vmatmul.f32.gmra.mxu0 %v1017
    %v1133 = vpop.f32.mrf.mxu0
    %v1134 = vadd.f32 0.0, %v1133
    %1135 = vmatmul.f32.gmra.mxu0 %v1020
    %v1136 = vpop.f32.mrf.mxu0
    %v1137 = vadd.f32 0.0, %v1136
    %1138 = vmatmul.f32.gmra.mxu0 %v1023
    %v1139 = vpop.f32.mrf.mxu0
    %v1140 = vadd.f32 0.0, %v1139
    %1141 = vmatmul.f32.gmra.mxu0 %v1026
    %v1142 = vpop.f32.mrf.mxu0
    %v1143 = vadd.f32 0.0, %v1142
    %1144 = vmatmul.f32.gmra.mxu0 %v1029
    %v1145 = vpop.f32.mrf.mxu0
    %v1146 = vadd.f32 0.0, %v1145
    %1147 = vmatmul.f32.gmra.mxu0 %v1032
    %v1148 = vpop.f32.mrf.mxu0
    %v1149 = vadd.f32 0.0, %v1148
    %1150 = vmatmul.f32.gmra.mxu0 %v1035
    %v1151 = vpop.f32.mrf.mxu0
    %v1152 = vadd.f32 0.0, %v1151
    %1153 = vmatmul.f32.gmra.mxu0 %v1038
    %v1154 = vpop.f32.mrf.mxu0
    %v1155 = vadd.f32 0.0, %v1154
    %1156 = vmatmul.f32.gmra.mxu0 %v1041
    %v1157 = vpop.f32.mrf.mxu0
    %v1158 = vadd.f32 0.0, %v1157
    %1159 = vmatmul.f32.gmra.mxu0 %v1044
    %v1160 = vpop.f32.mrf.mxu0
    %v1161 = vadd.f32 0.0, %v1160
    %1162 = vmatmul.f32.gmra.mxu0 %v1047
    %v1163 = vpop.f32.mrf.mxu0
    %v1164 = vadd.f32 0.0, %v1163
    %1165 = vmatmul.f32.gmra.mxu0 %v1050
    %v1166 = vpop.f32.mrf.mxu0
    %v1167 = vadd.f32 0.0, %v1166
    %1168 = vmatmul.f32.gmra.mxu0 %v1053
    %v1169 = vpop.f32.mrf.mxu0
    %v1170 = vadd.f32 0.0, %v1169
    %1171 = vmatmul.f32.gmra.mxu0 %v1056
    %v1172 = vpop.f32.mrf.mxu0
    %v1173 = vadd.f32 0.0, %v1172
    %1174 = vmatmul.f32.gmra.mxu0 %v1059
    %v1175 = vpop.f32.mrf.mxu0
    %v1176 = vadd.f32 0.0, %v1175
    %1177 = vmatmul.f32.gmra.mxu0 %v1062
    %v1178 = vpop.f32.mrf.mxu0
    %v1179 = vadd.f32 0.0, %v1178
    %1180 = vmatmul.f32.gmra.mxu0 %v1065
    %v1181 = vpop.f32.mrf.mxu0
    %v1182 = vadd.f32 0.0, %v1181
    %1183 = vmatmul.f32.gmra.mxu0 %v1068
    %v1184 = vpop.f32.mrf.mxu0
    %v1185 = vadd.f32 0.0, %v1184
    %1186 = vmatmul.f32.gmra.mxu0 %v1071
    %v1187 = vpop.f32.mrf.mxu0
    %v1188 = vadd.f32 0.0, %v1187
    %1189 = vdwg.mxu0
    %1222 = vrot.lane.b32.xlu0 %v1095, 16
    %v1223 = vpop.permute.xlu0 %1222
    %1224 = vrot.lane.b32.xlu0 %v1098, 16
    %v1225 = vpop.permute.xlu0 %1224
    %1226 = vrot.lane.b32.xlu0 %v1101, 16
    %v1227 = vpop.permute.xlu0 %1226
    %1228 = vrot.lane.b32.xlu0 %v1104, 16
    %v1229 = vpop.permute.xlu0 %1228
    %1230 = vrot.lane.b32.xlu0 %v1107, 16
    %v1231 = vpop.permute.xlu0 %1230
    %1232 = vrot.lane.b32.xlu0 %v1110, 16
    %v1233 = vpop.permute.xlu0 %1232
    %1234 = vrot.lane.b32.xlu0 %v1113, 16
    %v1235 = vpop.permute.xlu0 %1234
    %1236 = vrot.lane.b32.xlu0 %v1116, 16
    %v1237 = vpop.permute.xlu0 %1236
    %1238 = vrot.lane.b32.xlu0 %v1119, 16
    %v1239 = vpop.permute.xlu0 %1238
    %1240 = vrot.lane.b32.xlu0 %v1122, 16
    %v1241 = vpop.permute.xlu0 %1240
    %1242 = vrot.lane.b32.xlu0 %v1125, 16
    %v1243 = vpop.permute.xlu0 %1242
    %1244 = vrot.lane.b32.xlu0 %v1128, 16
    %v1245 = vpop.permute.xlu0 %1244
    %1246 = vrot.lane.b32.xlu0 %v1131, 16
    %v1247 = vpop.permute.xlu0 %1246
    %1248 = vrot.lane.b32.xlu0 %v1134, 16
    %v1249 = vpop.permute.xlu0 %1248
    %1250 = vrot.lane.b32.xlu0 %v1137, 16
    %v1251 = vpop.permute.xlu0 %1250
    %1252 = vrot.lane.b32.xlu0 %v1140, 16
    %v1253 = vpop.permute.xlu0 %1252
    %1254 = vrot.lane.b32.xlu0 %v1143, 16
    %v1255 = vpop.permute.xlu0 %1254
    %1256 = vrot.lane.b32.xlu0 %v1146, 16
    %v1257 = vpop.permute.xlu0 %1256
    %1258 = vrot.lane.b32.xlu0 %v1149, 16
    %v1259 = vpop.permute.xlu0 %1258
    %1260 = vrot.lane.b32.xlu0 %v1152, 16
    %v1261 = vpop.permute.xlu0 %1260
    %1262 = vrot.lane.b32.xlu0 %v1155, 16
    %v1263 = vpop.permute.xlu0 %1262
    %1264 = vrot.lane.b32.xlu0 %v1158, 16
    %v1265 = vpop.permute.xlu0 %1264
    %1266 = vrot.lane.b32.xlu0 %v1161, 16
    %v1267 = vpop.permute.xlu0 %1266
    %1268 = vrot.lane.b32.xlu0 %v1164, 16
    %v1269 = vpop.permute.xlu0 %1268
    %1270 = vrot.lane.b32.xlu0 %v1167, 16
    %v1271 = vpop.permute.xlu0 %1270
    %1272 = vrot.lane.b32.xlu0 %v1170, 16
    %v1273 = vpop.permute.xlu0 %1272
    %1274 = vrot.lane.b32.xlu0 %v1173, 16
    %v1275 = vpop.permute.xlu0 %1274
    %1276 = vrot.lane.b32.xlu0 %v1176, 16
    %v1277 = vpop.permute.xlu0 %1276
    %1278 = vrot.lane.b32.xlu0 %v1179, 16
    %v1279 = vpop.permute.xlu0 %1278
    %1280 = vrot.lane.b32.xlu0 %v1182, 16
    %v1281 = vpop.permute.xlu0 %1280
    %1282 = vrot.lane.b32.xlu0 %v1185, 16
    %v1283 = vpop.permute.xlu0 %1282
    %1284 = vrot.lane.b32.xlu0 %v1188, 16
    %v1285 = vpop.permute.xlu0 %1284
    %v1318 = vmul.f32 %v532, %v1223
    %v1319 = vmul.f32 %v534, %v1225
    %v1320 = vmul.f32 %v537, %v1227
    %v1321 = vmul.f32 %v539, %v1229
    %v1322 = vmul.f32 %v542, %v1231
    %v1323 = vmul.f32 %v544, %v1233
    %v1324 = vmul.f32 %v547, %v1235
    %v1325 = vmul.f32 %v549, %v1237
    %v1326 = vmul.f32 %v552, %v1239
    %v1327 = vmul.f32 %v554, %v1241
    %v1328 = vmul.f32 %v557, %v1243
    %v1329 = vmul.f32 %v559, %v1245
    %v1330 = vmul.f32 %v562, %v1247
    %v1331 = vmul.f32 %v564, %v1249
    %v1332 = vmul.f32 %v567, %v1251
    %v1333 = vmul.f32 %v569, %v1253
    %v1334 = vmul.f32 %v572, %v1255
    %v1335 = vmul.f32 %v574, %v1257
    %v1336 = vmul.f32 %v577, %v1259
    %v1337 = vmul.f32 %v579, %v1261
    %v1338 = vmul.f32 %v582, %v1263
    %v1339 = vmul.f32 %v584, %v1265
    %v1340 = vmul.f32 %v587, %v1267
    %v1341 = vmul.f32 %v589, %v1269
    %v1342 = vmul.f32 %v592, %v1271
    %v1343 = vmul.f32 %v594, %v1273
    %v1344 = vmul.f32 %v597, %v1275
    %v1345 = vmul.f32 %v599, %v1277
    %v1346 = vmul.f32 %v602, %v1279
    %v1347 = vmul.f32 %v604, %v1281
    %v1348 = vmul.f32 %v607, %v1283
    %v1349 = vmul.f32 %v609, %v1285
    %v1350 = vpack.c.bf16 %v1319, %v1318
    %v1351 = vpack.c.bf16 %v1321, %v1320
    %v1352 = vpack.c.bf16 %v1323, %v1322
    %v1353 = vpack.c.bf16 %v1325, %v1324
    %v1354 = vpack.c.bf16 %v1327, %v1326
    %v1355 = vpack.c.bf16 %v1329, %v1328
    %v1356 = vpack.c.bf16 %v1331, %v1330
    %v1357 = vpack.c.bf16 %v1333, %v1332
    %v1358 = vpack.c.bf16 %v1335, %v1334
    %v1359 = vpack.c.bf16 %v1337, %v1336
    %v1360 = vpack.c.bf16 %v1339, %v1338
    %v1361 = vpack.c.bf16 %v1341, %v1340
    %v1362 = vpack.c.bf16 %v1343, %v1342
    %v1363 = vpack.c.bf16 %v1345, %v1344
    %v1364 = vpack.c.bf16 %v1347, %v1346
    %v1365 = vpack.c.bf16 %v1349, %v1348
    %v1366 = vld [vmem:[%s8] sm:$0xff]
    %1383 = vrot.lane.b32.xlu0 %v1350, 112
    %v1384 = vpop.permute.xlu0 %1383
    %1385 = vrot.lane.b32.xlu0 %v1351, 112
    %v1386 = vpop.permute.xlu0 %1385
    %1387 = vrot.lane.b32.xlu0 %v1352, 112
    %v1388 = vpop.permute.xlu0 %1387
    %1389 = vrot.lane.b32.xlu0 %v1353, 112
    %v1390 = vpop.permute.xlu0 %1389
    %1391 = vrot.lane.b32.xlu0 %v1354, 112
    %v1392 = vpop.permute.xlu0 %1391
    %1393 = vrot.lane.b32.xlu0 %v1355, 112
    %v1394 = vpop.permute.xlu0 %1393
    %1395 = vrot.lane.b32.xlu0 %v1356, 112
    %v1396 = vpop.permute.xlu0 %1395
    %1397 = vrot.lane.b32.xlu0 %v1357, 112
    %v1398 = vpop.permute.xlu0 %1397
    %1399 = vrot.lane.b32.xlu0 %v1358, 112
    %v1400 = vpop.permute.xlu0 %1399
    %1401 = vrot.lane.b32.xlu0 %v1359, 112
    %v1402 = vpop.permute.xlu0 %1401
    %1403 = vrot.lane.b32.xlu0 %v1360, 112
    %v1404 = vpop.permute.xlu0 %1403
    %1405 = vrot.lane.b32.xlu0 %v1361, 112
    %v1406 = vpop.permute.xlu0 %1405
    %1407 = vrot.lane.b32.xlu0 %v1362, 112
    %v1408 = vpop.permute.xlu0 %1407
    %1409 = vrot.lane.b32.xlu0 %v1363, 112
    %v1410 = vpop.permute.xlu0 %1409
    %1411 = vrot.lane.b32.xlu0 %v1364, 112
    %v1412 = vpop.permute.xlu0 %1411
    %1413 = vrot.lane.b32.xlu0 %v1365, 112
    %v1414 = vpop.permute.xlu0 %1413
    %v1416 = vunpack.c.l.b16 %v1366
    %v1417 = vunpack.c.h.b16 %v1366
    %v1418 = vpack.c.b16 %v1416, %v1416
    %v1419 = vpack.c.b16 %v1417, %v1417
    %vm1420 = vcmask 64512
    %v1422 = vsel %vm1420, %v1384, 0
    %v1425 = vsel %vm1420, %v1386, 0
    %v1428 = vsel %vm1420, %v1388, 0
    %v1431 = vsel %vm1420, %v1390, 0
    %v1434 = vsel %vm1420, %v1392, 0
    %v1437 = vsel %vm1420, %v1394, 0
    %v1440 = vsel %vm1420, %v1396, 0
    %v1443 = vsel %vm1420, %v1398, 0
    %v1446 = vsel %vm1420, %v1400, 0
    %v1449 = vsel %vm1420, %v1402, 0
    %v1452 = vsel %vm1420, %v1404, 0
    %v1455 = vsel %vm1420, %v1406, 0
    %v1458 = vsel %vm1420, %v1408, 0
    %v1461 = vsel %vm1420, %v1410, 0
    %v1464 = vsel %vm1420, %v1412, 0
    %v1467 = vsel %vm1420, %v1414, 0
    %v1470 = vsel %vm1073, %v1418, 0
    %v1473 = vsel %vm1073, %v1419, 0
    %1475 = vmatpush.bf16.msra.mxu0 0
    %1476 = vmatpush.bf16.msra.mxu0 0
    %1477 = vmatpush.bf16.msra.mxu0 0
    %1478 = vmatpush.bf16.msra.mxu0 0
    %1479 = vmatpush.bf16.msra.mxu0 0
    %1480 = vmatpush.bf16.msra.mxu0 0
    %1481 = vmatpush.bf16.msra.mxu0 0
    %1482 = vmatpush.bf16.msra.mxu0 %v1470
    %1483 = vmatmul.bf16.gmra.mxu0 %v1422
    %v1484 = vpop.f32.mrf.mxu0
    %v1485 = vadd.f32 0.0, %v1484
    %v1486 = vpop.f32.mrf.mxu0
    %v1487 = vadd.f32 0.0, %v1486
    %1488 = vmatmul.bf16.gmra.mxu0 %v1425
    %v1489 = vpop.f32.mrf.mxu0
    %v1490 = vadd.f32 0.0, %v1489
    %v1491 = vpop.f32.mrf.mxu0
    %v1492 = vadd.f32 0.0, %v1491
    %1493 = vmatmul.bf16.gmra.mxu0 %v1428
    %v1494 = vpop.f32.mrf.mxu0
    %v1495 = vadd.f32 0.0, %v1494
    %v1496 = vpop.f32.mrf.mxu0
    %v1497 = vadd.f32 0.0, %v1496
    %1498 = vmatmul.bf16.gmra.mxu0 %v1431
    %v1499 = vpop.f32.mrf.mxu0
    %v1500 = vadd.f32 0.0, %v1499
    %v1501 = vpop.f32.mrf.mxu0
    %v1502 = vadd.f32 0.0, %v1501
    %1503 = vmatmul.bf16.gmra.mxu0 %v1434
    %v1504 = vpop.f32.mrf.mxu0
    %v1505 = vadd.f32 0.0, %v1504
    %v1506 = vpop.f32.mrf.mxu0
    %v1507 = vadd.f32 0.0, %v1506
    %1508 = vmatmul.bf16.gmra.mxu0 %v1437
    %v1509 = vpop.f32.mrf.mxu0
    %v1510 = vadd.f32 0.0, %v1509
    %v1511 = vpop.f32.mrf.mxu0
    %v1512 = vadd.f32 0.0, %v1511
    %1513 = vmatmul.bf16.gmra.mxu0 %v1440
    %v1514 = vpop.f32.mrf.mxu0
    %v1515 = vadd.f32 0.0, %v1514
    %v1516 = vpop.f32.mrf.mxu0
    %v1517 = vadd.f32 0.0, %v1516
    %1518 = vmatmul.bf16.gmra.mxu0 %v1443
    %v1519 = vpop.f32.mrf.mxu0
    %v1520 = vadd.f32 0.0, %v1519
    %v1521 = vpop.f32.mrf.mxu0
    %v1522 = vadd.f32 0.0, %v1521
    %1523 = vmatmul.bf16.gmra.mxu0 %v1446
    %v1524 = vpop.f32.mrf.mxu0
    %v1525 = vadd.f32 0.0, %v1524
    %v1526 = vpop.f32.mrf.mxu0
    %v1527 = vadd.f32 0.0, %v1526
    %1528 = vmatmul.bf16.gmra.mxu0 %v1449
    %v1529 = vpop.f32.mrf.mxu0
    %v1530 = vadd.f32 0.0, %v1529
    %v1531 = vpop.f32.mrf.mxu0
    %v1532 = vadd.f32 0.0, %v1531
    %1533 = vmatmul.bf16.gmra.mxu0 %v1452
    %v1534 = vpop.f32.mrf.mxu0
    %v1535 = vadd.f32 0.0, %v1534
    %v1536 = vpop.f32.mrf.mxu0
    %v1537 = vadd.f32 0.0, %v1536
    %1538 = vmatmul.bf16.gmra.mxu0 %v1455
    %v1539 = vpop.f32.mrf.mxu0
    %v1540 = vadd.f32 0.0, %v1539
    %v1541 = vpop.f32.mrf.mxu0
    %v1542 = vadd.f32 0.0, %v1541
    %1543 = vmatmul.bf16.gmra.mxu0 %v1458
    %v1544 = vpop.f32.mrf.mxu0
    %v1545 = vadd.f32 0.0, %v1544
    %v1546 = vpop.f32.mrf.mxu0
    %v1547 = vadd.f32 0.0, %v1546
    %1548 = vmatmul.bf16.gmra.mxu0 %v1461
    %v1549 = vpop.f32.mrf.mxu0
    %v1550 = vadd.f32 0.0, %v1549
    %v1551 = vpop.f32.mrf.mxu0
    %v1552 = vadd.f32 0.0, %v1551
    %1553 = vmatmul.bf16.gmra.mxu0 %v1464
    %v1554 = vpop.f32.mrf.mxu0
    %v1555 = vadd.f32 0.0, %v1554
    %v1556 = vpop.f32.mrf.mxu0
    %v1557 = vadd.f32 0.0, %v1556
    %1558 = vmatmul.bf16.gmra.mxu0 %v1467
    %v1559 = vpop.f32.mrf.mxu0
    %v1560 = vadd.f32 0.0, %v1559
    %v1561 = vpop.f32.mrf.mxu0
    %v1562 = vadd.f32 0.0, %v1561
    %1563 = vdwg.mxu0
    %1564 = vmatpush.bf16.msra.mxu0 0
    %1565 = vmatpush.bf16.msra.mxu0 0
    %1566 = vmatpush.bf16.msra.mxu0 0
    %1567 = vmatpush.bf16.msra.mxu0 0
    %1568 = vmatpush.bf16.msra.mxu0 0
    %1569 = vmatpush.bf16.msra.mxu0 0
    %1570 = vmatpush.bf16.msra.mxu0 0
    %1571 = vmatpush.bf16.msra.mxu0 %v1473
    %1572 = vmatmul.bf16.gmra.mxu0 %v1422
    %v1573 = vpop.f32.mrf.mxu0
    %v1574 = vadd.f32 0.0, %v1573
    %v1575 = vpop.f32.mrf.mxu0
    %v1576 = vadd.f32 0.0, %v1575
    %1577 = vmatmul.bf16.gmra.mxu0 %v1425
    %v1578 = vpop.f32.mrf.mxu0
    %v1579 = vadd.f32 0.0, %v1578
    %v1580 = vpop.f32.mrf.mxu0
    %v1581 = vadd.f32 0.0, %v1580
    %1582 = vmatmul.bf16.gmra.mxu0 %v1428
    %v1583 = vpop.f32.mrf.mxu0
    %v1584 = vadd.f32 0.0, %v1583
    %v1585 = vpop.f32.mrf.mxu0
    %v1586 = vadd.f32 0.0, %v1585
    %1587 = vmatmul.bf16.gmra.mxu0 %v1431
    %v1588 = vpop.f32.mrf.mxu0
    %v1589 = vadd.f32 0.0, %v1588
    %v1590 = vpop.f32.mrf.mxu0
    %v1591 = vadd.f32 0.0, %v1590
    %1592 = vmatmul.bf16.gmra.mxu0 %v1434
    %v1593 = vpop.f32.mrf.mxu0
    %v1594 = vadd.f32 0.0, %v1593
    %v1595 = vpop.f32.mrf.mxu0
    %v1596 = vadd.f32 0.0, %v1595
    %1597 = vmatmul.bf16.gmra.mxu0 %v1437
    %v1598 = vpop.f32.mrf.mxu0
    %v1599 = vadd.f32 0.0, %v1598
    %v1600 = vpop.f32.mrf.mxu0
    %v1601 = vadd.f32 0.0, %v1600
    %1602 = vmatmul.bf16.gmra.mxu0 %v1440
    %v1603 = vpop.f32.mrf.mxu0
    %v1604 = vadd.f32 0.0, %v1603
    %v1605 = vpop.f32.mrf.mxu0
    %v1606 = vadd.f32 0.0, %v1605
    %1607 = vmatmul.bf16.gmra.mxu0 %v1443
    %v1608 = vpop.f32.mrf.mxu0
    %v1609 = vadd.f32 0.0, %v1608
    %v1610 = vpop.f32.mrf.mxu0
    %v1611 = vadd.f32 0.0, %v1610
    %1612 = vmatmul.bf16.gmra.mxu0 %v1446
    %v1613 = vpop.f32.mrf.mxu0
    %v1614 = vadd.f32 0.0, %v1613
    %v1615 = vpop.f32.mrf.mxu0
    %v1616 = vadd.f32 0.0, %v1615
    %1617 = vmatmul.bf16.gmra.mxu0 %v1449
    %v1618 = vpop.f32.mrf.mxu0
    %v1619 = vadd.f32 0.0, %v1618
    %v1620 = vpop.f32.mrf.mxu0
    %v1621 = vadd.f32 0.0, %v1620
    %1622 = vmatmul.bf16.gmra.mxu0 %v1452
    %v1623 = vpop.f32.mrf.mxu0
    %v1624 = vadd.f32 0.0, %v1623
    %v1625 = vpop.f32.mrf.mxu0
    %v1626 = vadd.f32 0.0, %v1625
    %1627 = vmatmul.bf16.gmra.mxu0 %v1455
    %v1628 = vpop.f32.mrf.mxu0
    %v1629 = vadd.f32 0.0, %v1628
    %v1630 = vpop.f32.mrf.mxu0
    %v1631 = vadd.f32 0.0, %v1630
    %1632 = vmatmul.bf16.gmra.mxu0 %v1458
    %v1633 = vpop.f32.mrf.mxu0
    %v1634 = vadd.f32 0.0, %v1633
    %v1635 = vpop.f32.mrf.mxu0
    %v1636 = vadd.f32 0.0, %v1635
    %1637 = vmatmul.bf16.gmra.mxu0 %v1461
    %v1638 = vpop.f32.mrf.mxu0
    %v1639 = vadd.f32 0.0, %v1638
    %v1640 = vpop.f32.mrf.mxu0
    %v1641 = vadd.f32 0.0, %v1640
    %1642 = vmatmul.bf16.gmra.mxu0 %v1464
    %v1643 = vpop.f32.mrf.mxu0
    %v1644 = vadd.f32 0.0, %v1643
    %v1645 = vpop.f32.mrf.mxu0
    %v1646 = vadd.f32 0.0, %v1645
    %1647 = vmatmul.bf16.gmra.mxu0 %v1467
    %v1648 = vpop.f32.mrf.mxu0
    %v1649 = vadd.f32 0.0, %v1648
    %v1650 = vpop.f32.mrf.mxu0
    %v1651 = vadd.f32 0.0, %v1650
    %1652 = vdwg.mxu0
    %v1653 = vadd.f32 %v354, %v1485
    %v1654 = vadd.f32 %v443, %v1574
    %v1655 = vadd.f32 %v356, %v1487
    %v1656 = vadd.f32 %v445, %v1576
    %v1657 = vadd.f32 %v359, %v1490
    %v1658 = vadd.f32 %v448, %v1579
    %v1659 = vadd.f32 %v361, %v1492
    %v1660 = vadd.f32 %v450, %v1581
    %v1661 = vadd.f32 %v364, %v1495
    %v1662 = vadd.f32 %v453, %v1584
    %v1663 = vadd.f32 %v366, %v1497
    %v1664 = vadd.f32 %v455, %v1586
    %v1665 = vadd.f32 %v369, %v1500
    %v1666 = vadd.f32 %v458, %v1589
    %v1667 = vadd.f32 %v371, %v1502
    %v1668 = vadd.f32 %v460, %v1591
    %v1669 = vadd.f32 %v374, %v1505
    %v1670 = vadd.f32 %v463, %v1594
    %v1671 = vadd.f32 %v376, %v1507
    %v1672 = vadd.f32 %v465, %v1596
    %v1673 = vadd.f32 %v379, %v1510
    %v1674 = vadd.f32 %v468, %v1599
    %v1675 = vadd.f32 %v381, %v1512
    %v1676 = vadd.f32 %v470, %v1601
    %v1677 = vadd.f32 %v384, %v1515
    %v1678 = vadd.f32 %v473, %v1604
    %v1679 = vadd.f32 %v386, %v1517
    %v1680 = vadd.f32 %v475, %v1606
    %v1681 = vadd.f32 %v389, %v1520
    %v1682 = vadd.f32 %v478, %v1609
    %v1683 = vadd.f32 %v391, %v1522
    %v1684 = vadd.f32 %v480, %v1611
    %v1685 = vadd.f32 %v394, %v1525
    %v1686 = vadd.f32 %v483, %v1614
    %v1687 = vadd.f32 %v396, %v1527
    %v1688 = vadd.f32 %v485, %v1616
    %v1689 = vadd.f32 %v399, %v1530
    %v1690 = vadd.f32 %v488, %v1619
    %v1691 = vadd.f32 %v401, %v1532
    %v1692 = vadd.f32 %v490, %v1621
    %v1693 = vadd.f32 %v404, %v1535
    %v1694 = vadd.f32 %v493, %v1624
    %v1695 = vadd.f32 %v406, %v1537
    %v1696 = vadd.f32 %v495, %v1626
    %v1697 = vadd.f32 %v409, %v1540
    %v1698 = vadd.f32 %v498, %v1629
    %v1699 = vadd.f32 %v411, %v1542
    %v1700 = vadd.f32 %v500, %v1631
    %v1701 = vadd.f32 %v414, %v1545
    %v1702 = vadd.f32 %v503, %v1634
    %v1703 = vadd.f32 %v416, %v1547
    %v1704 = vadd.f32 %v505, %v1636
    %v1705 = vadd.f32 %v419, %v1550
    %v1706 = vadd.f32 %v508, %v1639
    %v1707 = vadd.f32 %v421, %v1552
    %v1708 = vadd.f32 %v510, %v1641
    %v1709 = vadd.f32 %v424, %v1555
    %v1710 = vadd.f32 %v513, %v1644
    %v1711 = vadd.f32 %v426, %v1557
    %v1712 = vadd.f32 %v515, %v1646
    %v1713 = vadd.f32 %v429, %v1560
    %v1714 = vadd.f32 %v518, %v1649
    %v1715 = vadd.f32 %v431, %v1562
    %v1716 = vadd.f32 %v520, %v1651
    %v1717 = vld [vmem:[%s7] sm:$0x3]
    %v1719 = vperm.slane %v1717, 0
    %v1720 = vperm.slane %v1717, 1
    %v1723 = vadd.f32 %v1653, %v1719
    %v1724 = vadd.f32 %v1654, %v1720
    %v1725 = vadd.f32 %v1655, %v1719
    %v1726 = vadd.f32 %v1656, %v1720
    %v1727 = vadd.f32 %v1657, %v1719
    %v1728 = vadd.f32 %v1658, %v1720
    %v1729 = vadd.f32 %v1659, %v1719
    %v1730 = vadd.f32 %v1660, %v1720
    %v1731 = vadd.f32 %v1661, %v1719
    %v1732 = vadd.f32 %v1662, %v1720
    %v1733 = vadd.f32 %v1663, %v1719
    %v1734 = vadd.f32 %v1664, %v1720
    %v1735 = vadd.f32 %v1665, %v1719
    %v1736 = vadd.f32 %v1666, %v1720
    %v1737 = vadd.f32 %v1667, %v1719
    %v1738 = vadd.f32 %v1668, %v1720
    %v1739 = vadd.f32 %v1669, %v1719
    %v1740 = vadd.f32 %v1670, %v1720
    %v1741 = vadd.f32 %v1671, %v1719
    %v1742 = vadd.f32 %v1672, %v1720
    %v1743 = vadd.f32 %v1673, %v1719
    %v1744 = vadd.f32 %v1674, %v1720
    %v1745 = vadd.f32 %v1675, %v1719
    %v1746 = vadd.f32 %v1676, %v1720
    %v1747 = vadd.f32 %v1677, %v1719
    %v1748 = vadd.f32 %v1678, %v1720
    %v1749 = vadd.f32 %v1679, %v1719
    %v1750 = vadd.f32 %v1680, %v1720
    %v1751 = vadd.f32 %v1681, %v1719
    %v1752 = vadd.f32 %v1682, %v1720
    %v1753 = vadd.f32 %v1683, %v1719
    %v1754 = vadd.f32 %v1684, %v1720
    %v1755 = vadd.f32 %v1685, %v1719
    %v1756 = vadd.f32 %v1686, %v1720
    %v1757 = vadd.f32 %v1687, %v1719
    %v1758 = vadd.f32 %v1688, %v1720
    %v1759 = vadd.f32 %v1689, %v1719
    %v1760 = vadd.f32 %v1690, %v1720
    %v1761 = vadd.f32 %v1691, %v1719
    %v1762 = vadd.f32 %v1692, %v1720
    %v1763 = vadd.f32 %v1693, %v1719
    %v1764 = vadd.f32 %v1694, %v1720
    %v1765 = vadd.f32 %v1695, %v1719
    %v1766 = vadd.f32 %v1696, %v1720
    %v1767 = vadd.f32 %v1697, %v1719
    %v1768 = vadd.f32 %v1698, %v1720
    %v1769 = vadd.f32 %v1699, %v1719
    %v1770 = vadd.f32 %v1700, %v1720
    %v1771 = vadd.f32 %v1701, %v1719
    %v1772 = vadd.f32 %v1702, %v1720
    %v1773 = vadd.f32 %v1703, %v1719
    %v1774 = vadd.f32 %v1704, %v1720
    %v1775 = vadd.f32 %v1705, %v1719
    %v1776 = vadd.f32 %v1706, %v1720
    %v1777 = vadd.f32 %v1707, %v1719
    %v1778 = vadd.f32 %v1708, %v1720
    %v1779 = vadd.f32 %v1709, %v1719
    %v1780 = vadd.f32 %v1710, %v1720
    %v1781 = vadd.f32 %v1711, %v1719
    %v1782 = vadd.f32 %v1712, %v1720
    %v1783 = vadd.f32 %v1713, %v1719
    %v1784 = vadd.f32 %v1714, %v1720
    %v1785 = vadd.f32 %v1715, %v1719
    %v1786 = vadd.f32 %v1716, %v1720
    %v1787 = vmax.f32 %v1723, 0.0
    %v1788 = vmax.f32 %v1724, 0.0
    %v1789 = vmax.f32 %v1725, 0.0
    %v1790 = vmax.f32 %v1726, 0.0
    %v1791 = vmax.f32 %v1727, 0.0
    %v1792 = vmax.f32 %v1728, 0.0
    %v1793 = vmax.f32 %v1729, 0.0
    %v1794 = vmax.f32 %v1730, 0.0
    %v1795 = vmax.f32 %v1731, 0.0
    %v1796 = vmax.f32 %v1732, 0.0
    %v1797 = vmax.f32 %v1733, 0.0
    %v1798 = vmax.f32 %v1734, 0.0
    %v1799 = vmax.f32 %v1735, 0.0
    %v1800 = vmax.f32 %v1736, 0.0
    %v1801 = vmax.f32 %v1737, 0.0
    %v1802 = vmax.f32 %v1738, 0.0
    %v1803 = vmax.f32 %v1739, 0.0
    %v1804 = vmax.f32 %v1740, 0.0
    %v1805 = vmax.f32 %v1741, 0.0
    %v1806 = vmax.f32 %v1742, 0.0
    %v1807 = vmax.f32 %v1743, 0.0
    %v1808 = vmax.f32 %v1744, 0.0
    %v1809 = vmax.f32 %v1745, 0.0
    %v1810 = vmax.f32 %v1746, 0.0
    %v1811 = vmax.f32 %v1747, 0.0
    %v1812 = vmax.f32 %v1748, 0.0
    %v1813 = vmax.f32 %v1749, 0.0
    %v1814 = vmax.f32 %v1750, 0.0
    %v1815 = vmax.f32 %v1751, 0.0
    %v1816 = vmax.f32 %v1752, 0.0
    %v1817 = vmax.f32 %v1753, 0.0
    %v1818 = vmax.f32 %v1754, 0.0
    %v1819 = vmax.f32 %v1755, 0.0
    %v1820 = vmax.f32 %v1756, 0.0
    %v1821 = vmax.f32 %v1757, 0.0
    %v1822 = vmax.f32 %v1758, 0.0
    %v1823 = vmax.f32 %v1759, 0.0
    %v1824 = vmax.f32 %v1760, 0.0
    %v1825 = vmax.f32 %v1761, 0.0
    %v1826 = vmax.f32 %v1762, 0.0
    %v1827 = vmax.f32 %v1763, 0.0
    %v1828 = vmax.f32 %v1764, 0.0
    %v1829 = vmax.f32 %v1765, 0.0
    %v1830 = vmax.f32 %v1766, 0.0
    %v1831 = vmax.f32 %v1767, 0.0
    %v1832 = vmax.f32 %v1768, 0.0
    %v1833 = vmax.f32 %v1769, 0.0
    %v1834 = vmax.f32 %v1770, 0.0
    %v1835 = vmax.f32 %v1771, 0.0
    %v1836 = vmax.f32 %v1772, 0.0
    %v1837 = vmax.f32 %v1773, 0.0
    %v1838 = vmax.f32 %v1774, 0.0
    %v1839 = vmax.f32 %v1775, 0.0
    %v1840 = vmax.f32 %v1776, 0.0
    %v1841 = vmax.f32 %v1777, 0.0
    %v1842 = vmax.f32 %v1778, 0.0
    %v1843 = vmax.f32 %v1779, 0.0
    %v1844 = vmax.f32 %v1780, 0.0
    %v1845 = vmax.f32 %v1781, 0.0
    %v1846 = vmax.f32 %v1782, 0.0
    %v1847 = vmax.f32 %v1783, 0.0
    %v1848 = vmax.f32 %v1784, 0.0
    %v1849 = vmax.f32 %v1785, 0.0
    %v1850 = vmax.f32 %v1786, 0.0
    %v1851 = vpack.c.bf16 %v1789, %v1787
    %v1852 = vpack.c.bf16 %v1790, %v1788
    %v1853 = vpack.c.bf16 %v1793, %v1791
    %v1854 = vpack.c.bf16 %v1794, %v1792
    %v1855 = vpack.c.bf16 %v1797, %v1795
    %v1856 = vpack.c.bf16 %v1798, %v1796
    %v1857 = vpack.c.bf16 %v1801, %v1799
    %v1858 = vpack.c.bf16 %v1802, %v1800
    %v1859 = vpack.c.bf16 %v1805, %v1803
    %v1860 = vpack.c.bf16 %v1806, %v1804
    %v1861 = vpack.c.bf16 %v1809, %v1807
    %v1862 = vpack.c.bf16 %v1810, %v1808
    %v1863 = vpack.c.bf16 %v1813, %v1811
    %v1864 = vpack.c.bf16 %v1814, %v1812
    %v1865 = vpack.c.bf16 %v1817, %v1815
    %v1866 = vpack.c.bf16 %v1818, %v1816
    %v1867 = vpack.c.bf16 %v1821, %v1819
    %v1868 = vpack.c.bf16 %v1822, %v1820
    %v1869 = vpack.c.bf16 %v1825, %v1823
    %v1870 = vpack.c.bf16 %v1826, %v1824
    %v1871 = vpack.c.bf16 %v1829, %v1827
    %v1872 = vpack.c.bf16 %v1830, %v1828
    %v1873 = vpack.c.bf16 %v1833, %v1831
    %v1874 = vpack.c.bf16 %v1834, %v1832
    %v1875 = vpack.c.bf16 %v1837, %v1835
    %v1876 = vpack.c.bf16 %v1838, %v1836
    %v1877 = vpack.c.bf16 %v1841, %v1839
    %v1878 = vpack.c.bf16 %v1842, %v1840
    %v1879 = vpack.c.bf16 %v1845, %v1843
    %v1880 = vpack.c.bf16 %v1846, %v1844
    %v1881 = vpack.c.bf16 %v1849, %v1847
    %v1882 = vpack.c.bf16 %v1850, %v1848
    %v1883 = vld [vmem:[#allocation5] sm:$0xff]
    %v1884 = vld [vmem:[#allocation5 + $0x8] sm:$0xff]
    %v1885 = vld [vmem:[#allocation5 + $0x10] sm:$0xff]
    %v1886 = vld [vmem:[#allocation5 + $0x18] sm:$0xff]
    %v1887 = vld [vmem:[#allocation5 + $0x20] sm:$0xff]
    %v1888 = vld [vmem:[#allocation5 + $0x28] sm:$0xff]
    %v1889 = vld [vmem:[#allocation5 + $0x30] sm:$0xff]
    %v1890 = vld [vmem:[#allocation5 + $0x38] sm:$0xff]
    %v1891 = vld [vmem:[#allocation5 + $0x40] sm:$0xff]
    %v1892 = vld [vmem:[#allocation5 + $0x48] sm:$0xff]
    %v1893 = vld [vmem:[#allocation5 + $0x50] sm:$0xff]
    %v1894 = vld [vmem:[#allocation5 + $0x58] sm:$0xff]
    %v1895 = vld [vmem:[#allocation5 + $0x60] sm:$0xff]
    %v1896 = vld [vmem:[#allocation5 + $0x68] sm:$0xff]
    %v1897 = vld [vmem:[#allocation5 + $0x70] sm:$0xff]
    %v1898 = vld [vmem:[#allocation5 + $0x78] sm:$0xff]
    %v1899 = vld [vmem:[#allocation5 + $0x80] sm:$0xff]
    %v1917 = vunpack.c.l.b16 %v1883
    %v1918 = vunpack.c.h.b16 %v1883
    %v1919 = vunpack.c.l.b16 %v1884
    %v1920 = vunpack.c.h.b16 %v1884
    %v1921 = vunpack.c.l.b16 %v1885
    %v1922 = vunpack.c.h.b16 %v1885
    %v1923 = vunpack.c.l.b16 %v1886
    %v1924 = vunpack.c.h.b16 %v1886
    %v1925 = vunpack.c.l.b16 %v1887
    %v1926 = vunpack.c.h.b16 %v1887
    %v1927 = vunpack.c.l.b16 %v1888
    %v1928 = vunpack.c.h.b16 %v1888
    %v1929 = vunpack.c.l.b16 %v1889
    %v1930 = vunpack.c.h.b16 %v1889
    %v1931 = vunpack.c.l.b16 %v1890
    %v1932 = vunpack.c.h.b16 %v1890
    %v1933 = vunpack.c.l.b16 %v1891
    %v1934 = vunpack.c.h.b16 %v1891
    %v1935 = vunpack.c.l.b16 %v1892
    %v1936 = vunpack.c.h.b16 %v1892
    %v1937 = vunpack.c.l.b16 %v1893
    %v1938 = vunpack.c.h.b16 %v1893
    %v1939 = vunpack.c.l.b16 %v1894
    %v1940 = vunpack.c.h.b16 %v1894
    %v1941 = vunpack.c.l.b16 %v1895
    %v1942 = vunpack.c.h.b16 %v1895
    %v1943 = vunpack.c.l.b16 %v1896
    %v1944 = vunpack.c.h.b16 %v1896
    %v1945 = vunpack.c.l.b16 %v1897
    %v1946 = vunpack.c.h.b16 %v1897
    %v1947 = vunpack.c.l.b16 %v1898
    %v1948 = vunpack.c.h.b16 %v1898
    %v1949 = vunpack.c.l.b16 %v1899
    %v1950 = vunpack.c.h.b16 %v1899
    %v1951 = vpack.c.b16 %v1919, %v1917
    %v1952 = vpack.c.b16 %v1920, %v1918
    %v1953 = vpack.c.b16 %v1923, %v1921
    %v1954 = vpack.c.b16 %v1924, %v1922
    %v1955 = vpack.c.b16 %v1927, %v1925
    %v1956 = vpack.c.b16 %v1928, %v1926
    %v1957 = vpack.c.b16 %v1931, %v1929
    %v1958 = vpack.c.b16 %v1932, %v1930
    %v1959 = vpack.c.b16 %v1935, %v1933
    %v1960 = vpack.c.b16 %v1936, %v1934
    %v1961 = vpack.c.b16 %v1939, %v1937
    %v1962 = vpack.c.b16 %v1940, %v1938
    %v1963 = vpack.c.b16 %v1943, %v1941
    %v1964 = vpack.c.b16 %v1944, %v1942
    %v1965 = vpack.c.b16 %v1947, %v1945
    %v1966 = vpack.c.b16 %v1948, %v1946
    %v1967 = vpack.c.b16 %v1949, %v1949
    %v1968 = vpack.c.b16 %v1950, %v1950
    %1987 = vmatpush.bf16.xpose.msra.mxu0 %v1965
    %1988 = vmatpush.bf16.xpose.msra.mxu0 %v1963
    %1989 = vmatpush.bf16.xpose.msra.mxu0 %v1961
    %1990 = vmatpush.bf16.xpose.msra.mxu0 %v1959
    %1991 = vmatpush.bf16.xpose.msra.mxu0 %v1957
    %1992 = vmatpush.bf16.xpose.msra.mxu0 %v1955
    %1993 = vmatpush.bf16.xpose.msra.mxu0 %v1953
    %1994 = vmatpush.bf16.xpose.msra.mxu0 %v1951
    %1995 = vmatmul.bf16.gmra.mxu0 %v1851
    %v1996 = vpop.f32.mrf.mxu0
    %v1997 = vadd.f32 0.0, %v1996
    %v1998 = vpop.f32.mrf.mxu0
    %v1999 = vadd.f32 0.0, %v1998
    %2000 = vmatmul.bf16.gmra.mxu0 %v1853
    %v2001 = vpop.f32.mrf.mxu0
    %v2002 = vadd.f32 0.0, %v2001
    %v2003 = vpop.f32.mrf.mxu0
    %v2004 = vadd.f32 0.0, %v2003
    %2005 = vmatmul.bf16.gmra.mxu0 %v1855
    %v2006 = vpop.f32.mrf.mxu0
    %v2007 = vadd.f32 0.0, %v2006
    %v2008 = vpop.f32.mrf.mxu0
    %v2009 = vadd.f32 0.0, %v2008
    %2010 = vmatmul.bf16.gmra.mxu0 %v1857
    %v2011 = vpop.f32.mrf.mxu0
    %v2012 = vadd.f32 0.0, %v2011
    %v2013 = vpop.f32.mrf.mxu0
    %v2014 = vadd.f32 0.0, %v2013
    %2015 = vmatmul.bf16.gmra.mxu0 %v1859
    %v2016 = vpop.f32.mrf.mxu0
    %v2017 = vadd.f32 0.0, %v2016
    %v2018 = vpop.f32.mrf.mxu0
    %v2019 = vadd.f32 0.0, %v2018
    %2020 = vmatmul.bf16.gmra.mxu0 %v1861
    %v2021 = vpop.f32.mrf.mxu0
    %v2022 = vadd.f32 0.0, %v2021
    %v2023 = vpop.f32.mrf.mxu0
    %v2024 = vadd.f32 0.0, %v2023
    %2025 = vmatmul.bf16.gmra.mxu0 %v1863
    %v2026 = vpop.f32.mrf.mxu0
    %v2027 = vadd.f32 0.0, %v2026
    %v2028 = vpop.f32.mrf.mxu0
    %v2029 = vadd.f32 0.0, %v2028
    %2030 = vmatmul.bf16.gmra.mxu0 %v1865
    %v2031 = vpop.f32.mrf.mxu0
    %v2032 = vadd.f32 0.0, %v2031
    %v2033 = vpop.f32.mrf.mxu0
    %v2034 = vadd.f32 0.0, %v2033
    %2035 = vmatmul.bf16.gmra.mxu0 %v1867
    %v2036 = vpop.f32.mrf.mxu0
    %v2037 = vadd.f32 0.0, %v2036
    %v2038 = vpop.f32.mrf.mxu0
    %v2039 = vadd.f32 0.0, %v2038
    %2040 = vmatmul.bf16.gmra.mxu0 %v1869
    %v2041 = vpop.f32.mrf.mxu0
    %v2042 = vadd.f32 0.0, %v2041
    %v2043 = vpop.f32.mrf.mxu0
    %v2044 = vadd.f32 0.0, %v2043
    %2045 = vmatmul.bf16.gmra.mxu0 %v1871
    %v2046 = vpop.f32.mrf.mxu0
    %v2047 = vadd.f32 0.0, %v2046
    %v2048 = vpop.f32.mrf.mxu0
    %v2049 = vadd.f32 0.0, %v2048
    %2050 = vmatmul.bf16.gmra.mxu0 %v1873
    %v2051 = vpop.f32.mrf.mxu0
    %v2052 = vadd.f32 0.0, %v2051
    %v2053 = vpop.f32.mrf.mxu0
    %v2054 = vadd.f32 0.0, %v2053
    %2055 = vmatmul.bf16.gmra.mxu0 %v1875
    %v2056 = vpop.f32.mrf.mxu0
    %v2057 = vadd.f32 0.0, %v2056
    %v2058 = vpop.f32.mrf.mxu0
    %v2059 = vadd.f32 0.0, %v2058
    %2060 = vmatmul.bf16.gmra.mxu0 %v1877
    %v2061 = vpop.f32.mrf.mxu0
    %v2062 = vadd.f32 0.0, %v2061
    %v2063 = vpop.f32.mrf.mxu0
    %v2064 = vadd.f32 0.0, %v2063
    %2065 = vmatmul.bf16.gmra.mxu0 %v1879
    %v2066 = vpop.f32.mrf.mxu0
    %v2067 = vadd.f32 0.0, %v2066
    %v2068 = vpop.f32.mrf.mxu0
    %v2069 = vadd.f32 0.0, %v2068
    %2070 = vmatmul.bf16.gmra.mxu0 %v1881
    %v2071 = vpop.f32.mrf.mxu0
    %v2072 = vadd.f32 0.0, %v2071
    %v2073 = vpop.f32.mrf.mxu0
    %v2074 = vadd.f32 0.0, %v2073
    %2075 = vdwg.mxu0
    %2076 = vmatpush.bf16.xpose.msra.mxu0 %v1966
    %2077 = vmatpush.bf16.xpose.msra.mxu0 %v1964
    %2078 = vmatpush.bf16.xpose.msra.mxu0 %v1962
    %2079 = vmatpush.bf16.xpose.msra.mxu0 %v1960
    %2080 = vmatpush.bf16.xpose.msra.mxu0 %v1958
    %2081 = vmatpush.bf16.xpose.msra.mxu0 %v1956
    %2082 = vmatpush.bf16.xpose.msra.mxu0 %v1954
    %2083 = vmatpush.bf16.xpose.msra.mxu0 %v1952
    %2084 = vmatmul.bf16.gmra.mxu0 %v1852
    %v2085 = vpop.f32.mrf.mxu0
    %v2086 = vadd.f32 %v1997, %v2085
    %v2087 = vpop.f32.mrf.mxu0
    %v2088 = vadd.f32 %v1999, %v2087
    %2089 = vmatmul.bf16.gmra.mxu0 %v1854
    %v2090 = vpop.f32.mrf.mxu0
    %v2091 = vadd.f32 %v2002, %v2090
    %v2092 = vpop.f32.mrf.mxu0
    %v2093 = vadd.f32 %v2004, %v2092
    %2094 = vmatmul.bf16.gmra.mxu0 %v1856
    %v2095 = vpop.f32.mrf.mxu0
    %v2096 = vadd.f32 %v2007, %v2095
    %v2097 = vpop.f32.mrf.mxu0
    %v2098 = vadd.f32 %v2009, %v2097
    %2099 = vmatmul.bf16.gmra.mxu0 %v1858
    %v2100 = vpop.f32.mrf.mxu0
    %v2101 = vadd.f32 %v2012, %v2100
    %v2102 = vpop.f32.mrf.mxu0
    %v2103 = vadd.f32 %v2014, %v2102
    %2104 = vmatmul.bf16.gmra.mxu0 %v1860
    %v2105 = vpop.f32.mrf.mxu0
    %v2106 = vadd.f32 %v2017, %v2105
    %v2107 = vpop.f32.mrf.mxu0
    %v2108 = vadd.f32 %v2019, %v2107
    %2109 = vmatmul.bf16.gmra.mxu0 %v1862
    %v2110 = vpop.f32.mrf.mxu0
    %v2111 = vadd.f32 %v2022, %v2110
    %v2112 = vpop.f32.mrf.mxu0
    %v2113 = vadd.f32 %v2024, %v2112
    %2114 = vmatmul.bf16.gmra.mxu0 %v1864
    %v2115 = vpop.f32.mrf.mxu0
    %v2116 = vadd.f32 %v2027, %v2115
    %v2117 = vpop.f32.mrf.mxu0
    %v2118 = vadd.f32 %v2029, %v2117
    %2119 = vmatmul.bf16.gmra.mxu0 %v1866
    %v2120 = vpop.f32.mrf.mxu0
    %v2121 = vadd.f32 %v2032, %v2120
    %v2122 = vpop.f32.mrf.mxu0
    %v2123 = vadd.f32 %v2034, %v2122
    %2124 = vmatmul.bf16.gmra.mxu0 %v1868
    %v2125 = vpop.f32.mrf.mxu0
    %v2126 = vadd.f32 %v2037, %v2125
    %v2127 = vpop.f32.mrf.mxu0
    %v2128 = vadd.f32 %v2039, %v2127
    %2129 = vmatmul.bf16.gmra.mxu0 %v1870
    %v2130 = vpop.f32.mrf.mxu0
    %v2131 = vadd.f32 %v2042, %v2130
    %v2132 = vpop.f32.mrf.mxu0
    %v2133 = vadd.f32 %v2044, %v2132
    %2134 = vmatmul.bf16.gmra.mxu0 %v1872
    %v2135 = vpop.f32.mrf.mxu0
    %v2136 = vadd.f32 %v2047, %v2135
    %v2137 = vpop.f32.mrf.mxu0
    %v2138 = vadd.f32 %v2049, %v2137
    %2139 = vmatmul.bf16.gmra.mxu0 %v1874
    %v2140 = vpop.f32.mrf.mxu0
    %v2141 = vadd.f32 %v2052, %v2140
    %v2142 = vpop.f32.mrf.mxu0
    %v2143 = vadd.f32 %v2054, %v2142
    %2144 = vmatmul.bf16.gmra.mxu0 %v1876
    %v2145 = vpop.f32.mrf.mxu0
    %v2146 = vadd.f32 %v2057, %v2145
    %v2147 = vpop.f32.mrf.mxu0
    %v2148 = vadd.f32 %v2059, %v2147
    %2149 = vmatmul.bf16.gmra.mxu0 %v1878
    %v2150 = vpop.f32.mrf.mxu0
    %v2151 = vadd.f32 %v2062, %v2150
    %v2152 = vpop.f32.mrf.mxu0
    %v2153 = vadd.f32 %v2064, %v2152
    %2154 = vmatmul.bf16.gmra.mxu0 %v1880
    %v2155 = vpop.f32.mrf.mxu0
    %v2156 = vadd.f32 %v2067, %v2155
    %v2157 = vpop.f32.mrf.mxu0
    %v2158 = vadd.f32 %v2069, %v2157
    %2159 = vmatmul.bf16.gmra.mxu0 %v1882
    %v2160 = vpop.f32.mrf.mxu0
    %v2161 = vadd.f32 %v2072, %v2160
    %v2162 = vpop.f32.mrf.mxu0
    %v2163 = vadd.f32 %v2074, %v2162
    %2164 = vdwg.mxu0
    %2165 = vmatpush.bf16.xpose.msra.mxu0 0
    %2166 = vmatpush.bf16.xpose.msra.mxu0 0
    %2167 = vmatpush.bf16.xpose.msra.mxu0 0
    %2168 = vmatpush.bf16.xpose.msra.mxu0 0
    %2169 = vmatpush.bf16.xpose.msra.mxu0 0
    %2170 = vmatpush.bf16.xpose.msra.mxu0 0
    %2171 = vmatpush.bf16.xpose.msra.mxu0 0
    %2172 = vmatpush.bf16.xpose.msra.mxu0 %v1967
    %2173 = vmatmul.bf16.gmra.mxu0 %v1851
    %v2174 = vpop.f32.mrf.mxu0
    %v2175 = vadd.f32 0.0, %v2174
    %v2176 = vpop.f32.mrf.mxu0
    %v2177 = vadd.f32 0.0, %v2176
    %2178 = vmatmul.bf16.gmra.mxu0 %v1853
    %v2179 = vpop.f32.mrf.mxu0
    %v2180 = vadd.f32 0.0, %v2179
    %v2181 = vpop.f32.mrf.mxu0
    %v2182 = vadd.f32 0.0, %v2181
    %2183 = vmatmul.bf16.gmra.mxu0 %v1855
    %v2184 = vpop.f32.mrf.mxu0
    %v2185 = vadd.f32 0.0, %v2184
    %v2186 = vpop.f32.mrf.mxu0
    %v2187 = vadd.f32 0.0, %v2186
    %2188 = vmatmul.bf16.gmra.mxu0 %v1857
    %v2189 = vpop.f32.mrf.mxu0
    %v2190 = vadd.f32 0.0, %v2189
    %v2191 = vpop.f32.mrf.mxu0
    %v2192 = vadd.f32 0.0, %v2191
    %2193 = vmatmul.bf16.gmra.mxu0 %v1859
    %v2194 = vpop.f32.mrf.mxu0
    %v2195 = vadd.f32 0.0, %v2194
    %v2196 = vpop.f32.mrf.mxu0
    %v2197 = vadd.f32 0.0, %v2196
    %2198 = vmatmul.bf16.gmra.mxu0 %v1861
    %v2199 = vpop.f32.mrf.mxu0
    %v2200 = vadd.f32 0.0, %v2199
    %v2201 = vpop.f32.mrf.mxu0
    %v2202 = vadd.f32 0.0, %v2201
    %2203 = vmatmul.bf16.gmra.mxu0 %v1863
    %v2204 = vpop.f32.mrf.mxu0
    %v2205 = vadd.f32 0.0, %v2204
    %v2206 = vpop.f32.mrf.mxu0
    %v2207 = vadd.f32 0.0, %v2206
    %2208 = vmatmul.bf16.gmra.mxu0 %v1865
    %v2209 = vpop.f32.mrf.mxu0
    %v2210 = vadd.f32 0.0, %v2209
    %v2211 = vpop.f32.mrf.mxu0
    %v2212 = vadd.f32 0.0, %v2211
    %2213 = vmatmul.bf16.gmra.mxu0 %v1867
    %v2214 = vpop.f32.mrf.mxu0
    %v2215 = vadd.f32 0.0, %v2214
    %v2216 = vpop.f32.mrf.mxu0
    %v2217 = vadd.f32 0.0, %v2216
    %2218 = vmatmul.bf16.gmra.mxu0 %v1869
    %v2219 = vpop.f32.mrf.mxu0
    %v2220 = vadd.f32 0.0, %v2219
    %v2221 = vpop.f32.mrf.mxu0
    %v2222 = vadd.f32 0.0, %v2221
    %2223 = vmatmul.bf16.gmra.mxu0 %v1871
    %v2224 = vpop.f32.mrf.mxu0
    %v2225 = vadd.f32 0.0, %v2224
    %v2226 = vpop.f32.mrf.mxu0
    %v2227 = vadd.f32 0.0, %v2226
    %2228 = vmatmul.bf16.gmra.mxu0 %v1873
    %v2229 = vpop.f32.mrf.mxu0
    %v2230 = vadd.f32 0.0, %v2229
    %v2231 = vpop.f32.mrf.mxu0
    %v2232 = vadd.f32 0.0, %v2231
    %2233 = vmatmul.bf16.gmra.mxu0 %v1875
    %v2234 = vpop.f32.mrf.mxu0
    %v2235 = vadd.f32 0.0, %v2234
    %v2236 = vpop.f32.mrf.mxu0
    %v2237 = vadd.f32 0.0, %v2236
    %2238 = vmatmul.bf16.gmra.mxu0 %v1877
    %v2239 = vpop.f32.mrf.mxu0
    %v2240 = vadd.f32 0.0, %v2239
    %v2241 = vpop.f32.mrf.mxu0
    %v2242 = vadd.f32 0.0, %v2241
    %2243 = vmatmul.bf16.gmra.mxu0 %v1879
    %v2244 = vpop.f32.mrf.mxu0
    %v2245 = vadd.f32 0.0, %v2244
    %v2246 = vpop.f32.mrf.mxu0
    %v2247 = vadd.f32 0.0, %v2246
    %2248 = vmatmul.bf16.gmra.mxu0 %v1881
    %v2249 = vpop.f32.mrf.mxu0
    %v2250 = vadd.f32 0.0, %v2249
    %v2251 = vpop.f32.mrf.mxu0
    %v2252 = vadd.f32 0.0, %v2251
    %2253 = vdwg.mxu0
    %2254 = vmatpush.bf16.xpose.msra.mxu0 0
    %2255 = vmatpush.bf16.xpose.msra.mxu0 0
    %2256 = vmatpush.bf16.xpose.msra.mxu0 0
    %2257 = vmatpush.bf16.xpose.msra.mxu0 0
    %2258 = vmatpush.bf16.xpose.msra.mxu0 0
    %2259 = vmatpush.bf16.xpose.msra.mxu0 0
    %2260 = vmatpush.bf16.xpose.msra.mxu0 0
    %2261 = vmatpush.bf16.xpose.msra.mxu0 %v1968
    %2262 = vmatmul.bf16.gmra.mxu0 %v1852
    %v2263 = vpop.f32.mrf.mxu0
    %v2264 = vadd.f32 %v2175, %v2263
    %v2265 = vpop.f32.mrf.mxu0
    %v2266 = vadd.f32 %v2177, %v2265
    %2267 = vmatmul.bf16.gmra.mxu0 %v1854
    %v2268 = vpop.f32.mrf.mxu0
    %v2269 = vadd.f32 %v2180, %v2268
    %v2270 = vpop.f32.mrf.mxu0
    %v2271 = vadd.f32 %v2182, %v2270
    %2272 = vmatmul.bf16.gmra.mxu0 %v1856
    %v2273 = vpop.f32.mrf.mxu0
    %v2274 = vadd.f32 %v2185, %v2273
    %v2275 = vpop.f32.mrf.mxu0
    %v2276 = vadd.f32 %v2187, %v2275
    %2277 = vmatmul.bf16.gmra.mxu0 %v1858
    %v2278 = vpop.f32.mrf.mxu0
    %v2279 = vadd.f32 %v2190, %v2278
    %v2280 = vpop.f32.mrf.mxu0
    %v2281 = vadd.f32 %v2192, %v2280
    %2282 = vmatmul.bf16.gmra.mxu0 %v1860
    %v2283 = vpop.f32.mrf.mxu0
    %v2284 = vadd.f32 %v2195, %v2283
    %v2285 = vpop.f32.mrf.mxu0
    %v2286 = vadd.f32 %v2197, %v2285
    %2287 = vmatmul.bf16.gmra.mxu0 %v1862
    %v2288 = vpop.f32.mrf.mxu0
    %v2289 = vadd.f32 %v2200, %v2288
    %v2290 = vpop.f32.mrf.mxu0
    %v2291 = vadd.f32 %v2202, %v2290
    %2292 = vmatmul.bf16.gmra.mxu0 %v1864
    %v2293 = vpop.f32.mrf.mxu0
    %v2294 = vadd.f32 %v2205, %v2293
    %v2295 = vpop.f32.mrf.mxu0
    %v2296 = vadd.f32 %v2207, %v2295
    %2297 = vmatmul.bf16.gmra.mxu0 %v1866
    %v2298 = vpop.f32.mrf.mxu0
    %v2299 = vadd.f32 %v2210, %v2298
    %v2300 = vpop.f32.mrf.mxu0
    %v2301 = vadd.f32 %v2212, %v2300
    %2302 = vmatmul.bf16.gmra.mxu0 %v1868
    %v2303 = vpop.f32.mrf.mxu0
    %v2304 = vadd.f32 %v2215, %v2303
    %v2305 = vpop.f32.mrf.mxu0
    %v2306 = vadd.f32 %v2217, %v2305
    %2307 = vmatmul.bf16.gmra.mxu0 %v1870
    %v2308 = vpop.f32.mrf.mxu0
    %v2309 = vadd.f32 %v2220, %v2308
    %v2310 = vpop.f32.mrf.mxu0
    %v2311 = vadd.f32 %v2222, %v2310
    %2312 = vmatmul.bf16.gmra.mxu0 %v1872
    %v2313 = vpop.f32.mrf.mxu0
    %v2314 = vadd.f32 %v2225, %v2313
    %v2315 = vpop.f32.mrf.mxu0
    %v2316 = vadd.f32 %v2227, %v2315
    %2317 = vmatmul.bf16.gmra.mxu0 %v1874
    %v2318 = vpop.f32.mrf.mxu0
    %v2319 = vadd.f32 %v2230, %v2318
    %v2320 = vpop.f32.mrf.mxu0
    %v2321 = vadd.f32 %v2232, %v2320
    %2322 = vmatmul.bf16.gmra.mxu0 %v1876
    %v2323 = vpop.f32.mrf.mxu0
    %v2324 = vadd.f32 %v2235, %v2323
    %v2325 = vpop.f32.mrf.mxu0
    %v2326 = vadd.f32 %v2237, %v2325
    %2327 = vmatmul.bf16.gmra.mxu0 %v1878
    %v2328 = vpop.f32.mrf.mxu0
    %v2329 = vadd.f32 %v2240, %v2328
    %v2330 = vpop.f32.mrf.mxu0
    %v2331 = vadd.f32 %v2242, %v2330
    %2332 = vmatmul.bf16.gmra.mxu0 %v1880
    %v2333 = vpop.f32.mrf.mxu0
    %v2334 = vadd.f32 %v2245, %v2333
    %v2335 = vpop.f32.mrf.mxu0
    %v2336 = vadd.f32 %v2247, %v2335
    %2337 = vmatmul.bf16.gmra.mxu0 %v1882
    %v2338 = vpop.f32.mrf.mxu0
    %v2339 = vadd.f32 %v2250, %v2338
    %v2340 = vpop.f32.mrf.mxu0
    %v2341 = vadd.f32 %v2252, %v2340
    %2342 = vdwg.mxu0
    %v2343 = vmul.f32 %v2264, %v1095
    %v2344 = vmul.f32 %v2266, %v1098
    %v2345 = vmul.f32 %v2269, %v1101
    %v2346 = vmul.f32 %v2271, %v1104
    %v2347 = vmul.f32 %v2274, %v1107
    %v2348 = vmul.f32 %v2276, %v1110
    %v2349 = vmul.f32 %v2279, %v1113
    %v2350 = vmul.f32 %v2281, %v1116
    %v2351 = vmul.f32 %v2284, %v1119
    %v2352 = vmul.f32 %v2286, %v1122
    %v2353 = vmul.f32 %v2289, %v1125
    %v2354 = vmul.f32 %v2291, %v1128
    %v2355 = vmul.f32 %v2294, %v1131
    %v2356 = vmul.f32 %v2296, %v1134
    %v2357 = vmul.f32 %v2299, %v1137
    %v2358 = vmul.f32 %v2301, %v1140
    %v2359 = vmul.f32 %v2304, %v1143
    %v2360 = vmul.f32 %v2306, %v1146
    %v2361 = vmul.f32 %v2309, %v1149
    %v2362 = vmul.f32 %v2311, %v1152
    %v2363 = vmul.f32 %v2314, %v1155
    %v2364 = vmul.f32 %v2316, %v1158
    %v2365 = vmul.f32 %v2319, %v1161
    %v2366 = vmul.f32 %v2321, %v1164
    %v2367 = vmul.f32 %v2324, %v1167
    %v2368 = vmul.f32 %v2326, %v1170
    %v2369 = vmul.f32 %v2329, %v1173
    %v2370 = vmul.f32 %v2331, %v1176
    %v2371 = vmul.f32 %v2334, %v1179
    %v2372 = vmul.f32 %v2336, %v1182
    %v2373 = vmul.f32 %v2339, %v1185
    %v2374 = vmul.f32 %v2341, %v1188
    %v2375 = vpack.c.bf16 %v2344, %v2343
    %v2376 = vpack.c.bf16 %v2346, %v2345
    %v2377 = vpack.c.bf16 %v2348, %v2347
    %v2378 = vpack.c.bf16 %v2350, %v2349
    %v2379 = vpack.c.bf16 %v2352, %v2351
    %v2380 = vpack.c.bf16 %v2354, %v2353
    %v2381 = vpack.c.bf16 %v2356, %v2355
    %v2382 = vpack.c.bf16 %v2358, %v2357
    %v2383 = vpack.c.bf16 %v2360, %v2359
    %v2384 = vpack.c.bf16 %v2362, %v2361
    %v2385 = vpack.c.bf16 %v2364, %v2363
    %v2386 = vpack.c.bf16 %v2366, %v2365
    %v2387 = vpack.c.bf16 %v2368, %v2367
    %v2388 = vpack.c.bf16 %v2370, %v2369
    %v2389 = vpack.c.bf16 %v2372, %v2371
    %v2390 = vpack.c.bf16 %v2374, %v2373
    %v2391 = vld [vmem:[%s11] sm:$0xf]
    %v2393 = vsel %vm1420, %v2375, 0
    %v2396 = vsel %vm1420, %v2376, 0
    %v2399 = vsel %vm1420, %v2377, 0
    %v2402 = vsel %vm1420, %v2378, 0
    %v2405 = vsel %vm1420, %v2379, 0
    %v2408 = vsel %vm1420, %v2380, 0
    %v2411 = vsel %vm1420, %v2381, 0
    %v2414 = vsel %vm1420, %v2382, 0
    %v2417 = vsel %vm1420, %v2383, 0
    %v2420 = vsel %vm1420, %v2384, 0
    %v2423 = vsel %vm1420, %v2385, 0
    %v2426 = vsel %vm1420, %v2386, 0
    %v2429 = vsel %vm1420, %v2387, 0
    %v2432 = vsel %vm1420, %v2388, 0
    %v2435 = vsel %vm1420, %v2389, 0
    %v2438 = vsel %vm1420, %v2390, 0
    %v2441 = vsel %vm1073, %v2391, 0
    %2443 = vmatpush.bf16.msra.mxu0 0
    %2444 = vmatpush.bf16.msra.mxu0 0
    %2445 = vmatpush.bf16.msra.mxu0 0
    %2446 = vmatpush.bf16.msra.mxu0 0
    %2447 = vmatpush.bf16.msra.mxu0 0
    %2448 = vmatpush.bf16.msra.mxu0 0
    %2449 = vmatpush.bf16.msra.mxu0 0
    %2450 = vmatpush.bf16.msra.mxu0 %v2441
    %2451 = vmatmul.bf16.gmra.mxu0 %v2393
    %v2452 = vpop.f32.mrf.mxu0
    %v2453 = vadd.f32 0.0, %v2452
    %v2454 = vpop.f32.mrf.mxu0
    %v2455 = vadd.f32 0.0, %v2454
    %2456 = vmatmul.bf16.gmra.mxu0 %v2396
    %v2457 = vpop.f32.mrf.mxu0
    %v2458 = vadd.f32 0.0, %v2457
    %v2459 = vpop.f32.mrf.mxu0
    %v2460 = vadd.f32 0.0, %v2459
    %2461 = vmatmul.bf16.gmra.mxu0 %v2399
    %v2462 = vpop.f32.mrf.mxu0
    %v2463 = vadd.f32 0.0, %v2462
    %v2464 = vpop.f32.mrf.mxu0
    %v2465 = vadd.f32 0.0, %v2464
    %2466 = vmatmul.bf16.gmra.mxu0 %v2402
    %v2467 = vpop.f32.mrf.mxu0
    %v2468 = vadd.f32 0.0, %v2467
    %v2469 = vpop.f32.mrf.mxu0
    %v2470 = vadd.f32 0.0, %v2469
    %2471 = vmatmul.bf16.gmra.mxu0 %v2405
    %v2472 = vpop.f32.mrf.mxu0
    %v2473 = vadd.f32 0.0, %v2472
    %v2474 = vpop.f32.mrf.mxu0
    %v2475 = vadd.f32 0.0, %v2474
    %2476 = vmatmul.bf16.gmra.mxu0 %v2408
    %v2477 = vpop.f32.mrf.mxu0
    %v2478 = vadd.f32 0.0, %v2477
    %v2479 = vpop.f32.mrf.mxu0
    %v2480 = vadd.f32 0.0, %v2479
    %2481 = vmatmul.bf16.gmra.mxu0 %v2411
    %v2482 = vpop.f32.mrf.mxu0
    %v2483 = vadd.f32 0.0, %v2482
    %v2484 = vpop.f32.mrf.mxu0
    %v2485 = vadd.f32 0.0, %v2484
    %2486 = vmatmul.bf16.gmra.mxu0 %v2414
    %v2487 = vpop.f32.mrf.mxu0
    %v2488 = vadd.f32 0.0, %v2487
    %v2489 = vpop.f32.mrf.mxu0
    %v2490 = vadd.f32 0.0, %v2489
    %2491 = vmatmul.bf16.gmra.mxu0 %v2417
    %v2492 = vpop.f32.mrf.mxu0
    %v2493 = vadd.f32 0.0, %v2492
    %v2494 = vpop.f32.mrf.mxu0
    %v2495 = vadd.f32 0.0, %v2494
    %2496 = vmatmul.bf16.gmra.mxu0 %v2420
    %v2497 = vpop.f32.mrf.mxu0
    %v2498 = vadd.f32 0.0, %v2497
    %v2499 = vpop.f32.mrf.mxu0
    %v2500 = vadd.f32 0.0, %v2499
    %2501 = vmatmul.bf16.gmra.mxu0 %v2423
    %v2502 = vpop.f32.mrf.mxu0
    %v2503 = vadd.f32 0.0, %v2502
    %v2504 = vpop.f32.mrf.mxu0
    %v2505 = vadd.f32 0.0, %v2504
    %2506 = vmatmul.bf16.gmra.mxu0 %v2426
    %v2507 = vpop.f32.mrf.mxu0
    %v2508 = vadd.f32 0.0, %v2507
    %v2509 = vpop.f32.mrf.mxu0
    %v2510 = vadd.f32 0.0, %v2509
    %2511 = vmatmul.bf16.gmra.mxu0 %v2429
    %v2512 = vpop.f32.mrf.mxu0
    %v2513 = vadd.f32 0.0, %v2512
    %v2514 = vpop.f32.mrf.mxu0
    %v2515 = vadd.f32 0.0, %v2514
    %2516 = vmatmul.bf16.gmra.mxu0 %v2432
    %v2517 = vpop.f32.mrf.mxu0
    %v2518 = vadd.f32 0.0, %v2517
    %v2519 = vpop.f32.mrf.mxu0
    %v2520 = vadd.f32 0.0, %v2519
    %2521 = vmatmul.bf16.gmra.mxu0 %v2435
    %v2522 = vpop.f32.mrf.mxu0
    %v2523 = vadd.f32 0.0, %v2522
    %v2524 = vpop.f32.mrf.mxu0
    %v2525 = vadd.f32 0.0, %v2524
    %2526 = vmatmul.bf16.gmra.mxu0 %v2438
    %v2527 = vpop.f32.mrf.mxu0
    %v2528 = vadd.f32 0.0, %v2527
    %v2529 = vpop.f32.mrf.mxu0
    %v2530 = vadd.f32 0.0, %v2529
    %2531 = vdwg.mxu0
    %v2532 = vadd.f32 %v2086, %v2453
    %v2533 = vadd.f32 %v2088, %v2455
    %v2534 = vadd.f32 %v2091, %v2458
    %v2535 = vadd.f32 %v2093, %v2460
    %v2536 = vadd.f32 %v2096, %v2463
    %v2537 = vadd.f32 %v2098, %v2465
    %v2538 = vadd.f32 %v2101, %v2468
    %v2539 = vadd.f32 %v2103, %v2470
    %v2540 = vadd.f32 %v2106, %v2473
    %v2541 = vadd.f32 %v2108, %v2475
    %v2542 = vadd.f32 %v2111, %v2478
    %v2543 = vadd.f32 %v2113, %v2480
    %v2544 = vadd.f32 %v2116, %v2483
    %v2545 = vadd.f32 %v2118, %v2485
    %v2546 = vadd.f32 %v2121, %v2488
    %v2547 = vadd.f32 %v2123, %v2490
    %v2548 = vadd.f32 %v2126, %v2493
    %v2549 = vadd.f32 %v2128, %v2495
    %v2550 = vadd.f32 %v2131, %v2498
    %v2551 = vadd.f32 %v2133, %v2500
    %v2552 = vadd.f32 %v2136, %v2503
    %v2553 = vadd.f32 %v2138, %v2505
    %v2554 = vadd.f32 %v2141, %v2508
    %v2555 = vadd.f32 %v2143, %v2510
    %v2556 = vadd.f32 %v2146, %v2513
    %v2557 = vadd.f32 %v2148, %v2515
    %v2558 = vadd.f32 %v2151, %v2518
    %v2559 = vadd.f32 %v2153, %v2520
    %v2560 = vadd.f32 %v2156, %v2523
    %v2561 = vadd.f32 %v2158, %v2525
    %v2562 = vadd.f32 %v2161, %v2528
    %v2563 = vadd.f32 %v2163, %v2530
    %v2564 = vld [vmem:[%s10] sm:$0x1]
    %v2566 = vperm.slane %v2564, 0
    %v2568 = vadd.f32 %v2532, %v2566
    %v2569 = vadd.f32 %v2533, %v2566
    %v2570 = vadd.f32 %v2534, %v2566
    %v2571 = vadd.f32 %v2535, %v2566
    %v2572 = vadd.f32 %v2536, %v2566
    %v2573 = vadd.f32 %v2537, %v2566
    %v2574 = vadd.f32 %v2538, %v2566
    %v2575 = vadd.f32 %v2539, %v2566
    %v2576 = vadd.f32 %v2540, %v2566
    %v2577 = vadd.f32 %v2541, %v2566
    %v2578 = vadd.f32 %v2542, %v2566
    %v2579 = vadd.f32 %v2543, %v2566
    %v2580 = vadd.f32 %v2544, %v2566
    %v2581 = vadd.f32 %v2545, %v2566
    %v2582 = vadd.f32 %v2546, %v2566
    %v2583 = vadd.f32 %v2547, %v2566
    %v2584 = vadd.f32 %v2548, %v2566
    %v2585 = vadd.f32 %v2549, %v2566
    %v2586 = vadd.f32 %v2550, %v2566
    %v2587 = vadd.f32 %v2551, %v2566
    %v2588 = vadd.f32 %v2552, %v2566
    %v2589 = vadd.f32 %v2553, %v2566
    %v2590 = vadd.f32 %v2554, %v2566
    %v2591 = vadd.f32 %v2555, %v2566
    %v2592 = vadd.f32 %v2556, %v2566
    %v2593 = vadd.f32 %v2557, %v2566
    %v2594 = vadd.f32 %v2558, %v2566
    %v2595 = vadd.f32 %v2559, %v2566
    %v2596 = vadd.f32 %v2560, %v2566
    %v2597 = vadd.f32 %v2561, %v2566
    %v2598 = vadd.f32 %v2562, %v2566
    %v2599 = vadd.f32 %v2563, %v2566
    %2600 = vst [vmem:[#allocation7] sm:$0xff] %v2568
    %2601 = vst [vmem:[#allocation7 + $0x8] sm:$0xff] %v2569
    %2602 = vst [vmem:[#allocation7 + $0x10] sm:$0xff] %v2570
    %2603 = vst [vmem:[#allocation7 + $0x18] sm:$0xff] %v2571
    %2604 = vst [vmem:[#allocation7 + $0x20] sm:$0xff] %v2572
    %2605 = vst [vmem:[#allocation7 + $0x28] sm:$0xff] %v2573
    %2606 = vst [vmem:[#allocation7 + $0x30] sm:$0xff] %v2574
    %2607 = vst [vmem:[#allocation7 + $0x38] sm:$0xff] %v2575
    %2608 = vst [vmem:[#allocation7 + $0x40] sm:$0xff] %v2576
    %2609 = vst [vmem:[#allocation7 + $0x48] sm:$0xff] %v2577
    %2610 = vst [vmem:[#allocation7 + $0x50] sm:$0xff] %v2578
    %2611 = vst [vmem:[#allocation7 + $0x58] sm:$0xff] %v2579
    %2612 = vst [vmem:[#allocation7 + $0x60] sm:$0xff] %v2580
    %2613 = vst [vmem:[#allocation7 + $0x68] sm:$0xff] %v2581
    %2614 = vst [vmem:[#allocation7 + $0x70] sm:$0xff] %v2582
    %2615 = vst [vmem:[#allocation7 + $0x78] sm:$0xff] %v2583
    %2616 = vst [vmem:[#allocation7 + $0x80] sm:$0xff] %v2584
    %2617 = vst [vmem:[#allocation7 + $0x88] sm:$0xff] %v2585
    %2618 = vst [vmem:[#allocation7 + $0x90] sm:$0xff] %v2586
    %2619 = vst [vmem:[#allocation7 + $0x98] sm:$0xff] %v2587
    %2620 = vst [vmem:[#allocation7 + $0xa0] sm:$0xff] %v2588
    %2621 = vst [vmem:[#allocation7 + $0xa8] sm:$0xff] %v2589
    %2622 = vst [vmem:[#allocation7 + $0xb0] sm:$0xff] %v2590
    %2623 = vst [vmem:[#allocation7 + $0xb8] sm:$0xff] %v2591
    %2624 = vst [vmem:[#allocation7 + $0xc0] sm:$0xff] %v2592
    %2625 = vst [vmem:[#allocation7 + $0xc8] sm:$0xff] %v2593
    %2626 = vst [vmem:[#allocation7 + $0xd0] sm:$0xff] %v2594
    %2627 = vst [vmem:[#allocation7 + $0xd8] sm:$0xff] %v2595
    %2628 = vst [vmem:[#allocation7 + $0xe0] sm:$0xff] %v2596
    %2629 = vst [vmem:[#allocation7 + $0xe8] sm:$0xff] %v2597
    %2630 = vst [vmem:[#allocation7 + $0xf0] sm:$0xff] %v2598
    %2631 = vst [vmem:[#allocation7 + $0xf8] sm:$0xff] %v2599
    // Predicated region
    $region58: #{tpu_custom_call.1} parent=1 // pred_check
      _
    $region59: #{tpu_custom_call.1} parent=1 // pred_check_branch
      %2633 = sbr.rel (0) target = $region61
    $region60: #{tpu_custom_call.1} parent=1 // pred_region
      %2635 = vsyncadd [#allocation4], 0
      %s2636 = sshll.u32 [#allocation7], 4
      %s2637 = int_to_ptr.vmem [resolvable:$true] %s2636
      %s2638 = sshll.u32 %s12, 4
      %s2639 = int_to_ptr.hbm [resolvable:$true] %s2638
      %2644 = dma.vmem_to_hbm [thread:$0]  %s2637, 4096, %s2639, [#allocation4], 128, 128, 8
    $region61: #{tpu_custom_call.1} parent=1 // pred_fallthru
      _
    // Predicated region
    $region62: #{tpu_custom_call.1} parent=1 // pred_check
      _
    $region63: #{tpu_custom_call.1} parent=1 // pred_check_branch
      %2646 = sbr.rel (0) target = $region65
    $region64: #{tpu_custom_call.1} parent=1 // pred_region
      %2648 = dma.done [#allocation4], 4096
    $region65: #{tpu_custom_call.1} parent=1 // pred_fallthru
      _
    %2649 = vsyncpa [#allocation3], 1
    %2650 = vsyncpa [#allocation6], 1
    %2651 = vsyncpa [#allocation4], 1

</llo_original>
